<compile_context>
chip_gen: v6e
topology: v6e:2x2x1
jax: 0.10.0
libtpu: 0.0.40
codegen_flags: <defaults>
</compile_context>

<pallas_src>
import math
from functools import partial

import jax
import jax.numpy as jnp
from jax.experimental import pallas as pl
from jax.experimental.pallas import tpu as pltpu

_NEG_INF = -1e30  # large finite negative; avoids exp(-inf - -inf) NaN hazards


def _pick_tile(total, target):
    """Largest 'nice' tile <= target that divides total (falls back to total)."""
    if total <= target:
        return total
    for cand in (target, 512, 256, 128, 64, 32, 16, 8):
        if cand <= target and total % cand == 0:
            return cand
    return total


def decoder_block_kernel(x_ref, g1_ref, g2_ref, wq_ref, wk_ref, wv_ref, wout_ref,
                         w1_ref, w2_ref, o_ref, *,
                         num_heads, eps, scale, q_tile, kv_tile, h_tile,
                         compute_dtype):
    f32 = jnp.float32
    cdt = compute_dtype

    x = x_ref[0].astype(f32)                       # (T, D) fp32 residual stream
    T, D = x.shape
    H = num_heads
    hd = D // H

    def rmsnorm(v, g):                             # fp32 statistics (matches torch)
        ms = jnp.mean(v * v, axis=-1, keepdims=True)
        return v * jax.lax.rsqrt(ms + eps) * g

    # ---------------- attention branch ----------------
    z = rmsnorm(x, g1_ref[...].astype(f32))
    z_c = z.astype(cdt)
    # Separate Q/K/V projections: each produces exactly D output lanes, so no
    # slicing of a (T, 3D) activation at non-128 boundaries.
    q = jnp.dot(z_c, wq_ref[...], preferred_element_type=f32)      # (T, D) fp32
    k = jnp.dot(z_c, wk_ref[...], preferred_element_type=f32)
    v = jnp.dot(z_c, wv_ref[...], preferred_element_type=f32)

    def to_heads(a):                               # (T, D) -> (H, T, hd)
        # lane slices + leading-axis stack (layout-friendly; no minor reshape)
        return jnp.stack([a[:, h * hd:(h + 1) * hd] for h in range(H)], axis=0)

    qh = to_heads(q)                               # fp32 (H, T, hd)
    kh = to_heads(k).astype(cdt)
    vh = to_heads(v).astype(cdt)

    n_q = T // q_tile
    out_tiles = []
    for qi in range(n_q):                          # static (trace-time) q tiling
        q0 = qi * q_tile
        q_end = q0 + q_tile
        qt = qh[:, q0:q_end, :].astype(cdt)        # (H, tq, hd)

        m = jnp.full((H, q_tile, 1), _NEG_INF, f32)
        l = jnp.zeros((H, q_tile, 1), f32)
        acc = jnp.zeros((H, q_tile, hd), f32)

        n_kv = pl.cdiv(q_end, kv_tile)             # skip fully-masked future tiles
        for ki in range(n_kv):                     # static KV streaming
            k0 = ki * kv_tile
            kt = kh[:, k0:k0 + kv_tile, :]         # (H, tk, hd)
            vt = vh[:, k0:k0 + kv_tile, :]
            # batched over heads: one MXU einsum, one softmax for all heads
            s = jnp.einsum("htd,hsd->hts", qt, kt,
                           preferred_element_type=f32) * scale      # (H, tq, tk)
            if k0 + kv_tile > q0 + 1:              # tile touches/crosses diagonal
                row = q0 + jax.lax.broadcasted_iota(jnp.int32, (q_tile, kv_tile), 0)
                col = k0 + jax.lax.broadcasted_iota(jnp.int32, (q_tile, kv_tile), 1)
                s = jnp.where((row >= col)[None, :, :], s, _NEG_INF)
            # online softmax update
            m_new = jnp.maximum(m, jnp.max(s, axis=-1, keepdims=True))
            alpha = jnp.exp(m - m_new)
            p = jnp.exp(s - m_new)
            l = alpha * l + jnp.sum(p, axis=-1, keepdims=True)
            acc = alpha * acc + jnp.einsum("hts,hsd->htd", p.astype(cdt), vt,
                                           preferred_element_type=f32)
            m = m_new
        # normalization divide on the EUP slot (free next to the exps)
        out_tiles.append(acc * pl.reciprocal(l, approx=True))
    attn_h = out_tiles[0] if n_q == 1 else jnp.concatenate(out_tiles, axis=1)
    # merge heads back to (T, D), then one full-width out_proj matmul
    attn = jnp.concatenate([attn_h[h] for h in range(H)], axis=-1)   # (T, D) fp32
    attn = jnp.dot(attn.astype(cdt), wout_ref[...], preferred_element_type=f32)
    x1 = x + attn                                   # residual 1 (fp32)

    # ---------------- MLP branch ----------------
    z2 = rmsnorm(x1, g2_ref[...].astype(f32))
    z2_c = z2.astype(cdt)
    hidden = w1_ref.shape[1]
    h2 = jnp.zeros((T, D), f32)
    for hi in range(hidden // h_tile):              # static hidden-dim chunking
        h0 = hi * h_tile
        h1 = jnp.dot(z2_c, w1_ref[:, h0:h0 + h_tile], preferred_element_type=f32)
        h1 = h1 * jax.nn.sigmoid(h1)                # SiLU in fp32
        h2 = h2 + jnp.dot(h1.astype(cdt), w2_ref[h0:h0 + h_tile, :],
                          preferred_element_type=f32)
    # TODO(synk): Dropout1d is identity at inference; training-time dropout not implemented.
    o_ref[0] = (x1 + h2).astype(o_ref.dtype)        # residual 2


def decoder_block(x, params, num_heads, *, eps=None, compute_dtype=jnp.bfloat16,
                  q_tile=None, kv_tile=None, hidden_tile=None):
    B, T, D = x.shape
    hidden = params["w1"].shape[1]
    if eps is None:
        eps = float(jnp.finfo(x.dtype).eps)         # torch RMSNorm(eps=None) default
    scale = 1.0 / math.sqrt(D // num_heads)

    q_tile = q_tile or _pick_tile(T, 256)
    kv_tile = kv_tile or _pick_tile(T, 256)
    hidden_tile = hidden_tile or _pick_tile(hidden, 512)
    assert T % q_tile == 0 and T % kv_tile == 0 and hidden % hidden_tile == 0

    cdt = compute_dtype
    wqkv = params["wqkv_t"].astype(cdt)             # (D, 3D): [q | k | v] columns
    wq, wk, wv = wqkv[:, :D], wqkv[:, D:2 * D], wqkv[:, 2 * D:]
    wout = params["wout_t"].astype(cdt)
    w1 = params["w1"].astype(cdt)
    w2 = params["w2"].astype(cdt)
    g1 = params["g1"].astype(jnp.float32)
    g2 = params["g2"].astype(jnp.float32)

    kernel = partial(decoder_block_kernel, num_heads=num_heads, eps=eps, scale=scale,
                     q_tile=q_tile, kv_tile=kv_tile, h_tile=hidden_tile,
                     compute_dtype=cdt)

    def resident(arr):                              # whole array resident each step
        nd = arr.ndim
        return pl.BlockSpec(arr.shape, lambda b, _nd=nd: (0,) * _nd)

    # Explicit VMEM budget: resident compute-dtype weights + double-buffered
    # x/out blocks + fp32 activation working set, with headroom; capped below
    # v7x's 64 MiB physical VMEM, floored at 16 MiB (v5e default scoped limit).
    w_item = jnp.dtype(cdt).itemsize
    weight_bytes = (4 * D * D + 2 * D * hidden) * w_item + 2 * D * 4
    io_bytes = 2 * 2 * T * D * x.dtype.itemsize
    scratch_bytes = (6 * T * D + 2 * num_heads * q_tile * kv_tile
                     + 2 * T * hidden_tile) * 4
    vmem_bytes = int(1.4 * (weight_bytes + io_bytes + scratch_bytes)) + (2 << 20)
    vmem_bytes = max(16 << 20, min(vmem_bytes, 56 << 20))

    return pl.pallas_call(
        kernel,
        out_shape=jax.ShapeDtypeStruct((B, T, D), x.dtype),
        grid=(B,),
        in_specs=[
            pl.BlockSpec((1, T, D), lambda b: (b, 0, 0)),   # x: one batch row/step
            resident(g1), resident(g2),
            resident(wq), resident(wk), resident(wv), resident(wout),
            resident(w1), resident(w2),
        ],
        out_specs=pl.BlockSpec((1, T, D), lambda b: (b, 0, 0)),
        compiler_params=pltpu.CompilerParams(
            dimension_semantics=("parallel",),      # batch axis -> 2 TCs on v7x
            vmem_limit_bytes=vmem_bytes),
    )(x, g1, g2, wq, wk, wv, wout, w1, w2)


def decoder_block_ref(x, params, num_heads):
    """Pure-JAX fp32 reference mirroring the PyTorch forward (eval mode)."""
    eps = float(jnp.finfo(x.dtype).eps)
    B, T, D = x.shape
    hd = D // num_heads
    scale = 1.0 / math.sqrt(hd)

    def rmsnorm(v, g):
        return v * jax.lax.rsqrt(jnp.mean(v * v, -1, keepdims=True) + eps) * g

    z = rmsnorm(x, params["g1"])
    qkv = z @ params["wqkv_t"]
    q, k, v = jnp.split(qkv, 3, axis=-1)
    q = q.reshape(B, T, num_heads, hd).transpose(0, 2, 1, 3)
    k = k.reshape(B, T, num_heads, hd).transpose(0, 2, 1, 3)
    v = v.reshape(B, T, num_heads, hd).transpose(0, 2, 1, 3)
    s = jnp.einsum("bhqd,bhkd->bhqk", q, k) * scale
    mask = jnp.tril(jnp.ones((T, T), dtype=bool))
    s = jnp.where(mask, s, -jnp.inf)
    p = jax.nn.softmax(s, axis=-1)
    z = jnp.einsum("bhqk,bhkd->bhqd", p, v).transpose(0, 2, 1, 3).reshape(B, T, D)
    z = z @ params["wout_t"]
    x1 = x + z
    z2 = rmsnorm(x1, params["g2"])
    h = z2 @ params["w1"]
    h = h * jax.nn.sigmoid(h)
    return x1 + h @ params["w2"]


if __name__ == "__main__":
    B, T, D = 2, 8, 32
    NUM_HEADS = 4
    FEED_FORWARD_RATIO = 2
    HIDDEN = FEED_FORWARD_RATIO * D

    key = jax.random.PRNGKey(0)
    kx, k1, k2, k3, k4 = jax.random.split(key, 5)

    x = jax.random.normal(kx, (B, T, D), dtype=jnp.float32)

    params = {
        # RMSNorm weights initialize to ones in torch
        "g1": jnp.ones((1, D), dtype=jnp.float32),
        "g2": jnp.ones((1, D), dtype=jnp.float32),
        # Linear weights (torch shape (out, in)) stored pre-transposed -> (in, out)
        "wqkv_t": (0.02 * jax.random.normal(k1, (3 * D, D), dtype=jnp.float32)).T,
        "wout_t": (0.02 * jax.random.normal(k2, (D, D), dtype=jnp.float32)).T,
        "w1": (0.02 * jax.random.normal(k3, (HIDDEN, D), dtype=jnp.float32)).T,
        "w2": (0.02 * jax.random.normal(k4, (D, HIDDEN), dtype=jnp.float32)).T,
    }

    ref = decoder_block_ref(x, params, NUM_HEADS)

    # fp32 compute path: tight structural check vs the pure-JAX reference
    # (small slack for approx reciprocal + fp32 accumulation ordering).
    out_f32 = jax.block_until_ready(
        decoder_block(x, params, NUM_HEADS, compute_dtype=jnp.float32))
    assert out_f32.shape == (B, T, D)
    assert jnp.allclose(out_f32, ref, atol=1e-3, rtol=1e-3), "fp32 mismatch vs reference"

    # bf16 MXU path (fp32 accumulation): default fast path, looser tolerance.
    out_bf16 = jax.block_until_ready(
        decoder_block(x, params, NUM_HEADS, compute_dtype=jnp.bfloat16))
    assert out_bf16.shape == (B, T, D)
    assert jnp.allclose(out_bf16, ref, atol=2e-2, rtol=2e-2), "bf16 mismatch vs reference"

    print("KERNEL_OK")
</pallas_src>

<mosaic_0001>
module attributes {stable_mosaic.version = 11 : i64} {
  func.func @decoder_block_kernel(%arg0: i32, %arg1: memref<1x8x32xf32, #tpu.memory_space<vmem>>, %arg2: memref<1x32xf32, #tpu.memory_space<vmem>>, %arg3: memref<1x32xf32, #tpu.memory_space<vmem>>, %arg4: memref<32x32xf32, #tpu.memory_space<vmem>>, %arg5: memref<32x32xf32, #tpu.memory_space<vmem>>, %arg6: memref<32x32xf32, #tpu.memory_space<vmem>>, %arg7: memref<32x32xf32, #tpu.memory_space<vmem>>, %arg8: memref<32x64xf32, #tpu.memory_space<vmem>>, %arg9: memref<64x32xf32, #tpu.memory_space<vmem>>, %arg10: memref<1x8x32xf32, #tpu.memory_space<vmem>>) attributes {dimension_semantics = [#tpu.dimension_semantics<parallel>], iteration_bounds = array<i64: 2>, scalar_prefetch = 0 : i64, scratch_operands = 0 : i64, tpu.core_type = #tpu.core_type<tc>, window_params = [{transform_indices = @transform_0, window_bounds = array<i64: 1, 8, 32>}, {pipeline_mode = #tpu.pipeline_mode<synchronous>, transform_indices = @transform_1, window_bounds = array<i64: 1, 32>}, {pipeline_mode = #tpu.pipeline_mode<synchronous>, transform_indices = @transform_2, window_bounds = array<i64: 1, 32>}, {pipeline_mode = #tpu.pipeline_mode<synchronous>, transform_indices = @transform_3, window_bounds = array<i64: 32, 32>}, {pipeline_mode = #tpu.pipeline_mode<synchronous>, transform_indices = @transform_4, window_bounds = array<i64: 32, 32>}, {pipeline_mode = #tpu.pipeline_mode<synchronous>, transform_indices = @transform_5, window_bounds = array<i64: 32, 32>}, {pipeline_mode = #tpu.pipeline_mode<synchronous>, transform_indices = @transform_6, window_bounds = array<i64: 32, 32>}, {pipeline_mode = #tpu.pipeline_mode<synchronous>, transform_indices = @transform_7, window_bounds = array<i64: 32, 64>}, {pipeline_mode = #tpu.pipeline_mode<synchronous>, transform_indices = @transform_8, window_bounds = array<i64: 64, 32>}, {transform_indices = @transform_9, window_bounds = array<i64: 1, 8, 32>}]} {
    %c0 = arith.constant 0 : index
    %c0_0 = arith.constant 0 : index
    %c0_1 = arith.constant 0 : index
    %0 = vector.load %arg1[%c0, %c0_0, %c0_1] : memref<1x8x32xf32, #tpu.memory_space<vmem>>, vector<1x8x32xf32>
    %1 = vector.shape_cast %0 : vector<1x8x32xf32> to vector<8x32xf32>
    %c0_2 = arith.constant 0 : index
    %c0_3 = arith.constant 0 : index
    %2 = vector.load %arg2[%c0_2, %c0_3] : memref<1x32xf32, #tpu.memory_space<vmem>>, vector<1x32xf32>
    %3 = arith.mulf %1, %1 : vector<8x32xf32>
    %cst = arith.constant dense<0.000000e+00> : vector<8xf32>
    %4 = vector.multi_reduction <add>, %3, %cst [1] : vector<8x32xf32> to vector<8xf32>
    %5 = vector.shape_cast %4 : vector<8xf32> to vector<8x1xf32>
    %cst_4 = arith.constant 3.200000e+01 : f32
    %6 = vector.broadcast %cst_4 : f32 to vector<8x1xf32>
    %7 = arith.divf %5, %6 : vector<8x1xf32>
    %cst_5 = arith.constant 1.1920929E-7 : f32
    %8 = vector.broadcast %cst_5 : f32 to vector<8x1xf32>
    %9 = arith.addf %7, %8 : vector<8x1xf32>
    %10 = math.rsqrt %9 : vector<8x1xf32>
    %11 = vector.broadcast %10 : vector<8x1xf32> to vector<8x32xf32>
    %12 = arith.mulf %1, %11 : vector<8x32xf32>
    %13 = vector.broadcast %2 : vector<1x32xf32> to vector<8x32xf32>
    %14 = arith.mulf %12, %13 : vector<8x32xf32>
    %c0_6 = arith.constant 0 : index
    %c0_7 = arith.constant 0 : index
    %15 = vector.load %arg4[%c0_6, %c0_7] : memref<32x32xf32, #tpu.memory_space<vmem>>, vector<32x32xf32>
    %cst_8 = arith.constant dense<0.000000e+00> : vector<8x32xf32>
    %16 = tpu.matmul %14, %15, %cst_8 {dimension_numbers = #tpu.dot_dimension_numbers<[1], [0], [0], [1], [0, 0, 1, 1], [], []>} : vector<8x32xf32>, vector<32x32xf32>, vector<8x32xf32> -> vector<8x32xf32>
    %c0_9 = arith.constant 0 : index
    %c0_10 = arith.constant 0 : index
    %17 = vector.load %arg5[%c0_9, %c0_10] : memref<32x32xf32, #tpu.memory_space<vmem>>, vector<32x32xf32>
    %cst_11 = arith.constant dense<0.000000e+00> : vector<8x32xf32>
    %18 = tpu.matmul %14, %17, %cst_11 {dimension_numbers = #tpu.dot_dimension_numbers<[1], [0], [0], [1], [0, 0, 1, 1], [], []>} : vector<8x32xf32>, vector<32x32xf32>, vector<8x32xf32> -> vector<8x32xf32>
    %c0_12 = arith.constant 0 : index
    %c0_13 = arith.constant 0 : index
    %19 = vector.load %arg6[%c0_12, %c0_13] : memref<32x32xf32, #tpu.memory_space<vmem>>, vector<32x32xf32>
    %cst_14 = arith.constant dense<0.000000e+00> : vector<8x32xf32>
    %20 = tpu.matmul %14, %19, %cst_14 {dimension_numbers = #tpu.dot_dimension_numbers<[1], [0], [0], [1], [0, 0, 1, 1], [], []>} : vector<8x32xf32>, vector<32x32xf32>, vector<8x32xf32> -> vector<8x32xf32>
    %21 = vector.extract_strided_slice %16 {offsets = [0, 0], sizes = [8, 8], strides = [1, 1]} : vector<8x32xf32> to vector<8x8xf32>
    %22 = vector.extract_strided_slice %16 {offsets = [0, 8], sizes = [8, 8], strides = [1, 1]} : vector<8x32xf32> to vector<8x8xf32>
    %23 = vector.extract_strided_slice %16 {offsets = [0, 16], sizes = [8, 8], strides = [1, 1]} : vector<8x32xf32> to vector<8x8xf32>
    %24 = vector.extract_strided_slice %16 {offsets = [0, 24], sizes = [8, 8], strides = [1, 1]} : vector<8x32xf32> to vector<8x8xf32>
    %25 = vector.shape_cast %21 : vector<8x8xf32> to vector<1x8x8xf32>
    %26 = vector.shape_cast %22 : vector<8x8xf32> to vector<1x8x8xf32>
    %27 = vector.shape_cast %23 : vector<8x8xf32> to vector<1x8x8xf32>
    %28 = vector.shape_cast %24 : vector<8x8xf32> to vector<1x8x8xf32>
    %29 = tpu.concatenate %25, %26, %27, %28 in 0 : vector<1x8x8xf32>, vector<1x8x8xf32>, vector<1x8x8xf32>, vector<1x8x8xf32> -> vector<4x8x8xf32>
    %30 = vector.extract_strided_slice %18 {offsets = [0, 0], sizes = [8, 8], strides = [1, 1]} : vector<8x32xf32> to vector<8x8xf32>
    %31 = vector.extract_strided_slice %18 {offsets = [0, 8], sizes = [8, 8], strides = [1, 1]} : vector<8x32xf32> to vector<8x8xf32>
    %32 = vector.extract_strided_slice %18 {offsets = [0, 16], sizes = [8, 8], strides = [1, 1]} : vector<8x32xf32> to vector<8x8xf32>
    %33 = vector.extract_strided_slice %18 {offsets = [0, 24], sizes = [8, 8], strides = [1, 1]} : vector<8x32xf32> to vector<8x8xf32>
    %34 = vector.shape_cast %30 : vector<8x8xf32> to vector<1x8x8xf32>
    %35 = vector.shape_cast %31 : vector<8x8xf32> to vector<1x8x8xf32>
    %36 = vector.shape_cast %32 : vector<8x8xf32> to vector<1x8x8xf32>
    %37 = vector.shape_cast %33 : vector<8x8xf32> to vector<1x8x8xf32>
    %38 = tpu.concatenate %34, %35, %36, %37 in 0 : vector<1x8x8xf32>, vector<1x8x8xf32>, vector<1x8x8xf32>, vector<1x8x8xf32> -> vector<4x8x8xf32>
    %39 = vector.extract_strided_slice %20 {offsets = [0, 0], sizes = [8, 8], strides = [1, 1]} : vector<8x32xf32> to vector<8x8xf32>
    %40 = vector.extract_strided_slice %20 {offsets = [0, 8], sizes = [8, 8], strides = [1, 1]} : vector<8x32xf32> to vector<8x8xf32>
    %41 = vector.extract_strided_slice %20 {offsets = [0, 16], sizes = [8, 8], strides = [1, 1]} : vector<8x32xf32> to vector<8x8xf32>
    %42 = vector.extract_strided_slice %20 {offsets = [0, 24], sizes = [8, 8], strides = [1, 1]} : vector<8x32xf32> to vector<8x8xf32>
    %43 = vector.shape_cast %39 : vector<8x8xf32> to vector<1x8x8xf32>
    %44 = vector.shape_cast %40 : vector<8x8xf32> to vector<1x8x8xf32>
    %45 = vector.shape_cast %41 : vector<8x8xf32> to vector<1x8x8xf32>
    %46 = vector.shape_cast %42 : vector<8x8xf32> to vector<1x8x8xf32>
    %47 = tpu.concatenate %43, %44, %45, %46 in 0 : vector<1x8x8xf32>, vector<1x8x8xf32>, vector<1x8x8xf32>, vector<1x8x8xf32> -> vector<4x8x8xf32>
    %cst_15 = arith.constant -1.000000e+30 : f32
    %48 = vector.broadcast %cst_15 : f32 to vector<4x8x1xf32>
    %cst_16 = arith.constant 0.000000e+00 : f32
    %49 = vector.broadcast %cst_16 : f32 to vector<4x8x1xf32>
    %cst_17 = arith.constant 0.000000e+00 : f32
    %50 = vector.broadcast %cst_17 : f32 to vector<4x8x8xf32>
    "tpu.trace_start"() <{level = 10 : i32, message = "htd,hsd->hts"}> : () -> ()
    %cst_18 = arith.constant dense<0.000000e+00> : vector<4x8x8xf32>
    %51 = tpu.matmul %29, %38, %cst_18 {dimension_numbers = #tpu.dot_dimension_numbers<[2], [2], [1], [1], [0, 0, 0, 1, 1, 1], [0], [0]>} : vector<4x8x8xf32>, vector<4x8x8xf32>, vector<4x8x8xf32> -> vector<4x8x8xf32>
    "tpu.trace_stop"() : () -> ()
    %cst_19 = arith.constant 0.353553385 : f32
    %52 = vector.broadcast %cst_19 : f32 to vector<4x8x8xf32>
    %53 = arith.mulf %51, %52 : vector<4x8x8xf32>
    %54 = tpu.iota {dimensions = array<i32: 0>} : vector<8x8xi32>
    %c0_i32 = arith.constant 0 : i32
    %55 = vector.broadcast %c0_i32 : i32 to vector<8x8xi32>
    %56 = arith.addi %55, %54 : vector<8x8xi32>
    %57 = tpu.iota {dimensions = array<i32: 1>} : vector<8x8xi32>
    %c0_i32_20 = arith.constant 0 : i32
    %58 = vector.broadcast %c0_i32_20 : i32 to vector<8x8xi32>
    %59 = arith.addi %58, %57 : vector<8x8xi32>
    %60 = arith.cmpi sge, %56, %59 : vector<8x8xi32>
    %61 = vector.shape_cast %60 : vector<8x8xi1> to vector<1x8x8xi1>
    %cst_21 = arith.constant -1.000000e+30 : f32
    %62 = vector.shape_cast %61 : vector<1x8x8xi1> to vector<1x8x8xi1>
    %63 = vector.broadcast %62 : vector<1x8x8xi1> to vector<4x8x8xi1>
    %64 = vector.broadcast %cst_21 : f32 to vector<4x8x8xf32>
    %65 = arith.select %63, %53, %64 : vector<4x8x8xi1>, vector<4x8x8xf32>
    %cst_22 = arith.constant dense<0xFF800000> : vector<4x8xf32>
    %66 = vector.multi_reduction <maximumf>, %65, %cst_22 [2] : vector<4x8x8xf32> to vector<4x8xf32>
    %67 = vector.shape_cast %66 : vector<4x8xf32> to vector<4x8x1xf32>
    %68 = arith.maximumf %48, %67 : vector<4x8x1xf32>
    %69 = arith.subf %48, %68 : vector<4x8x1xf32>
    %70 = math.exp %69 : vector<4x8x1xf32>
    %71 = vector.broadcast %68 : vector<4x8x1xf32> to vector<4x8x8xf32>
    %72 = arith.subf %65, %71 : vector<4x8x8xf32>
    %73 = math.exp %72 : vector<4x8x8xf32>
    %74 = arith.mulf %70, %49 : vector<4x8x1xf32>
    %cst_23 = arith.constant dense<0.000000e+00> : vector<4x8xf32>
    %75 = vector.multi_reduction <add>, %73, %cst_23 [2] : vector<4x8x8xf32> to vector<4x8xf32>
    %76 = vector.shape_cast %75 : vector<4x8xf32> to vector<4x8x1xf32>
    %77 = arith.addf %74, %76 : vector<4x8x1xf32>
    %78 = vector.broadcast %70 : vector<4x8x1xf32> to vector<4x8x8xf32>
    %79 = arith.mulf %78, %50 : vector<4x8x8xf32>
    "tpu.trace_start"() <{level = 10 : i32, message = "hts,hsd->htd"}> : () -> ()
    %cst_24 = arith.constant dense<0.000000e+00> : vector<4x8x8xf32>
    %80 = tpu.matmul %73, %47, %cst_24 {dimension_numbers = #tpu.dot_dimension_numbers<[2], [1], [1], [2], [0, 0, 0, 1, 1, 2], [0], [0]>} : vector<4x8x8xf32>, vector<4x8x8xf32>, vector<4x8x8xf32> -> vector<4x8x8xf32>
    "tpu.trace_stop"() : () -> ()
    %81 = arith.addf %79, %80 : vector<4x8x8xf32>
    %82 = tpu.reciprocal %77 {approx = true} : vector<4x8x1xf32> -> vector<4x8x1xf32>
    %83 = vector.broadcast %82 : vector<4x8x1xf32> to vector<4x8x8xf32>
    %84 = arith.mulf %81, %83 : vector<4x8x8xf32>
    %85 = vector.extract_strided_slice %84 {offsets = [0, 0, 0], sizes = [1, 8, 8], strides = [1, 1, 1]} : vector<4x8x8xf32> to vector<1x8x8xf32>
    %86 = vector.shape_cast %85 : vector<1x8x8xf32> to vector<8x8xf32>
    %87 = vector.extract_strided_slice %84 {offsets = [1, 0, 0], sizes = [1, 8, 8], strides = [1, 1, 1]} : vector<4x8x8xf32> to vector<1x8x8xf32>
    %88 = vector.shape_cast %87 : vector<1x8x8xf32> to vector<8x8xf32>
    %89 = vector.extract_strided_slice %84 {offsets = [2, 0, 0], sizes = [1, 8, 8], strides = [1, 1, 1]} : vector<4x8x8xf32> to vector<1x8x8xf32>
    %90 = vector.shape_cast %89 : vector<1x8x8xf32> to vector<8x8xf32>
    %91 = vector.extract_strided_slice %84 {offsets = [3, 0, 0], sizes = [1, 8, 8], strides = [1, 1, 1]} : vector<4x8x8xf32> to vector<1x8x8xf32>
    %92 = vector.shape_cast %91 : vector<1x8x8xf32> to vector<8x8xf32>
    %93 = tpu.concatenate %86, %88, %90, %92 in 1 : vector<8x8xf32>, vector<8x8xf32>, vector<8x8xf32>, vector<8x8xf32> -> vector<8x32xf32>
    %c0_25 = arith.constant 0 : index
    %c0_26 = arith.constant 0 : index
    %94 = vector.load %arg7[%c0_25, %c0_26] : memref<32x32xf32, #tpu.memory_space<vmem>>, vector<32x32xf32>
    %cst_27 = arith.constant dense<0.000000e+00> : vector<8x32xf32>
    %95 = tpu.matmul %93, %94, %cst_27 {dimension_numbers = #tpu.dot_dimension_numbers<[1], [0], [0], [1], [0, 0, 1, 1], [], []>} : vector<8x32xf32>, vector<32x32xf32>, vector<8x32xf32> -> vector<8x32xf32>
    %96 = arith.addf %1, %95 : vector<8x32xf32>
    %c0_28 = arith.constant 0 : index
    %c0_29 = arith.constant 0 : index
    %97 = vector.load %arg3[%c0_28, %c0_29] : memref<1x32xf32, #tpu.memory_space<vmem>>, vector<1x32xf32>
    %98 = arith.mulf %96, %96 : vector<8x32xf32>
    %cst_30 = arith.constant dense<0.000000e+00> : vector<8xf32>
    %99 = vector.multi_reduction <add>, %98, %cst_30 [1] : vector<8x32xf32> to vector<8xf32>
    %100 = vector.shape_cast %99 : vector<8xf32> to vector<8x1xf32>
    %cst_31 = arith.constant 3.200000e+01 : f32
    %101 = vector.broadcast %cst_31 : f32 to vector<8x1xf32>
    %102 = arith.divf %100, %101 : vector<8x1xf32>
    %cst_32 = arith.constant 1.1920929E-7 : f32
    %103 = vector.broadcast %cst_32 : f32 to vector<8x1xf32>
    %104 = arith.addf %102, %103 : vector<8x1xf32>
    %105 = math.rsqrt %104 : vector<8x1xf32>
    %106 = vector.broadcast %105 : vector<8x1xf32> to vector<8x32xf32>
    %107 = arith.mulf %96, %106 : vector<8x32xf32>
    %108 = vector.broadcast %97 : vector<1x32xf32> to vector<8x32xf32>
    %109 = arith.mulf %107, %108 : vector<8x32xf32>
    %cst_33 = arith.constant 0.000000e+00 : f32
    %110 = vector.broadcast %cst_33 : f32 to vector<8x32xf32>
    %c0_34 = arith.constant 0 : index
    %c0_35 = arith.constant 0 : index
    %111 = vector.load %arg8[%c0_34, %c0_35] : memref<32x64xf32, #tpu.memory_space<vmem>>, vector<32x64xf32>
    %cst_36 = arith.constant dense<0.000000e+00> : vector<8x64xf32>
    %112 = tpu.matmul %109, %111, %cst_36 {dimension_numbers = #tpu.dot_dimension_numbers<[1], [0], [0], [1], [0, 0, 1, 1], [], []>} : vector<8x32xf32>, vector<32x64xf32>, vector<8x64xf32> -> vector<8x64xf32>
    %113 = arith.negf %112 : vector<8x64xf32>
    %114 = math.exp %113 : vector<8x64xf32>
    %cst_37 = arith.constant 1.000000e+00 : f32
    %115 = vector.broadcast %cst_37 : f32 to vector<8x64xf32>
    %116 = arith.addf %115, %114 : vector<8x64xf32>
    %117 = arith.divf %115, %116 : vector<8x64xf32>
    %118 = arith.mulf %112, %117 : vector<8x64xf32>
    %c0_38 = arith.constant 0 : index
    %c0_39 = arith.constant 0 : index
    %119 = vector.load %arg9[%c0_38, %c0_39] : memref<64x32xf32, #tpu.memory_space<vmem>>, vector<64x32xf32>
    %cst_40 = arith.constant dense<0.000000e+00> : vector<8x32xf32>
    %120 = tpu.matmul %118, %119, %cst_40 {dimension_numbers = #tpu.dot_dimension_numbers<[1], [0], [0], [1], [0, 0, 1, 1], [], []>} : vector<8x64xf32>, vector<64x32xf32>, vector<8x32xf32> -> vector<8x32xf32>
    %121 = arith.addf %110, %120 : vector<8x32xf32>
    %122 = arith.addf %96, %121 : vector<8x32xf32>
    %c0_41 = arith.constant 0 : index
    %c0_42 = arith.constant 0 : index
    %c0_43 = arith.constant 0 : index
    %123 = vector.load %arg10[%c0_41, %c0_42, %c0_43] : memref<1x8x32xf32, #tpu.memory_space<vmem>>, vector<1x8x32xf32>
    %124 = vector.shape_cast %123 : vector<1x8x32xf32> to vector<8x32xf32>
    %125 = vector.shape_cast %122 : vector<8x32xf32> to vector<1x8x32xf32>
    tpu.vector_store %arg10[%c0_41, %c0_42, %c0_43], %125 {strides = array<i32>} : memref<1x8x32xf32, #tpu.memory_space<vmem>>, vector<1x8x32xf32>,
    return
  }
  func.func @transform_0(%arg0: i32) -> (i32, i32, i32) {
    %c0_i32 = arith.constant 0 : i32
    %c0_i32_0 = arith.constant 0 : i32
    %c0_i32_1 = arith.constant 0 : i32
    return %arg0, %c0_i32, %c0_i32_0 : i32, i32, i32
  }
  func.func @transform_1(%arg0: i32) -> (i32, i32) {
    %c0_i32 = arith.constant 0 : i32
    %c0_i32_0 = arith.constant 0 : i32
    %c0_i32_1 = arith.constant 0 : i32
    return %c0_i32, %c0_i32_0 : i32, i32
  }
  func.func @transform_2(%arg0: i32) -> (i32, i32) {
    %c0_i32 = arith.constant 0 : i32
    %c0_i32_0 = arith.constant 0 : i32
    %c0_i32_1 = arith.constant 0 : i32
    return %c0_i32, %c0_i32_0 : i32, i32
  }
  func.func @transform_3(%arg0: i32) -> (i32, i32) {
    %c0_i32 = arith.constant 0 : i32
    %c0_i32_0 = arith.constant 0 : i32
    %c0_i32_1 = arith.constant 0 : i32
    return %c0_i32, %c0_i32_0 : i32, i32
  }
  func.func @transform_4(%arg0: i32) -> (i32, i32) {
    %c0_i32 = arith.constant 0 : i32
    %c0_i32_0 = arith.constant 0 : i32
    %c0_i32_1 = arith.constant 0 : i32
    return %c0_i32, %c0_i32_0 : i32, i32
  }
  func.func @transform_5(%arg0: i32) -> (i32, i32) {
    %c0_i32 = arith.constant 0 : i32
    %c0_i32_0 = arith.constant 0 : i32
    %c0_i32_1 = arith.constant 0 : i32
    return %c0_i32, %c0_i32_0 : i32, i32
  }
  func.func @transform_6(%arg0: i32) -> (i32, i32) {
    %c0_i32 = arith.constant 0 : i32
    %c0_i32_0 = arith.constant 0 : i32
    %c0_i32_1 = arith.constant 0 : i32
    return %c0_i32, %c0_i32_0 : i32, i32
  }
  func.func @transform_7(%arg0: i32) -> (i32, i32) {
    %c0_i32 = arith.constant 0 : i32
    %c0_i32_0 = arith.constant 0 : i32
    %c0_i32_1 = arith.constant 0 : i32
    return %c0_i32, %c0_i32_0 : i32, i32
  }
  func.func @transform_8(%arg0: i32) -> (i32, i32) {
    %c0_i32 = arith.constant 0 : i32
    %c0_i32_0 = arith.constant 0 : i32
    %c0_i32_1 = arith.constant 0 : i32
    return %c0_i32, %c0_i32_0 : i32, i32
  }
  func.func @transform_9(%arg0: i32) -> (i32, i32, i32) {
    %c0_i32 = arith.constant 0 : i32
    %c0_i32_0 = arith.constant 0 : i32
    %c0_i32_1 = arith.constant 0 : i32
    return %arg0, %c0_i32, %c0_i32_0 : i32, i32, i32
  }
}

</mosaic_0001>

<llo_original>
// kernel: tpu_custom_call.1
$region0: #{tpu_custom_call.1}
  #allocation0 [shape = 'u32[]', space=smem, size = 0x4, offset = 0x4, fixed_abs, tag = 'smem constant byte address 0x4 - core index']
  #allocation1 [shape = 'u32[144,128]{1,0:T(1,128)}', space=vmem, size = 0x12000, scoped, tag = 'internal scratch']
  %s0 = inlined_call_operand.hbm [shape: f32[2,8,32], index: 0, kind: input, shape index: {}]
  %s1 = inlined_call_operand.vmem [shape: f32[1,32], index: 1, kind: input, shape index: {}]
  %s2 = inlined_call_operand.vmem [shape: f32[1,32], index: 2, kind: input, shape index: {}]
  %s3 = inlined_call_operand.vmem [shape: f32[32,32], index: 3, kind: input, shape index: {}]
  %s4 = inlined_call_operand.vmem [shape: f32[32,32], index: 4, kind: input, shape index: {}]
  %s5 = inlined_call_operand.vmem [shape: f32[32,32], index: 5, kind: input, shape index: {}]
  %s6 = inlined_call_operand.hbm [shape: f32[32,32], index: 6, kind: input, shape index: {}]
  %s7 = inlined_call_operand.hbm [shape: f32[32,64], index: 7, kind: input, shape index: {}]
  %s8 = inlined_call_operand.vmem [shape: f32[64,32], index: 8, kind: input, shape index: {}]
  %s9 = inlined_call_operand.hbm [shape: f32[2,8,32], index: 9, kind: output, shape index: {}]
  %s10 = sld [smem:[#allocation0]]
  $region81: #{tpu_custom_call.1} parent=0
    _
  %s12 = ssub.s32 1, %s10
  %s13 = scalar_select 0, %s12, %s10
  $region1: #{tpu_custom_call.1} parent=0
    #allocation2 [shape = 'u8[8192]{0}', space=vmem, size = 0x2000, scoped, tag = 'input window, operand 0']
    #allocation3 [shape = 's32[2]{0}', space=sflag, size = 0x8, scoped, tag = 'scoped memory for tpu_custom_call.1']
    #allocation4 [shape = 's32[2]{0}', space=sflag, size = 0x8, scoped, tag = 'scoped memory for tpu_custom_call.1']
    #allocation5 [shape = 'u8[16384]{0}', space=vmem, size = 0x4000, scoped, tag = 'input window, operand 6, single buffered']
    #allocation6 [shape = 's32[1]{0}', space=sflag, size = 0x4, scoped, tag = 'scoped memory for tpu_custom_call.1']
    #allocation7 [shape = 'u8[16384]{0}', space=vmem, size = 0x4000, scoped, tag = 'input window, operand 7, single buffered']
    #allocation8 [shape = 'u8[8192]{0}', space=vmem, size = 0x2000, scoped, tag = 'output window, operand 0']
    %14 = vsyncpa [#allocation3], 0
    %s15 = scalar_lea.sflag [#allocation3], 1
    %16 = vsyncpa %s15, 0
    %17 = vsyncpa [#allocation6], 0
    %18 = vsyncpa [#allocation4], 0
    %s19 = scalar_lea.sflag [#allocation4], 1
    %20 = vsyncpa %s19, 0
    loop: start=0, step=1, limit=4
    $region2: #{tpu_custom_call.1} parent=1 // loop_pre_header
      _
    $region3: #{tpu_custom_call.1} parent=1 // loop_header
      %s22 = sphi 0, %s26
      %p23 = scmp.ge.s32.totalorder %s22, 4
      %s32 = sphi 0, %s34
      %s35 = sphi 0, %s32
      %s36 = sphi 0, %s35
      %s52 = sphi 0, %s36
      %s56 = sphi 0, %s56
      %s58 = sphi 0, %s56
      %s59 = sphi 0, %s58
      %s73 = sphi 0, %s59
      %s77 = sphi 0, %s77
      %s79 = sphi 0, %s77
      %s80 = sphi 0, %s79
      %s94 = sphi 0, %s80
      %s98 = sphi 0, %s98
      %s100 = sphi 0, %s98
      %s101 = sphi 0, %s100
      %s115 = sphi 0, %s101
      %s119 = sphi 0, %s119
      %s121 = sphi 0, %s119
      %s122 = sphi 0, %s121
      %s136 = sphi 0, %s122
      %s140 = sphi 0, %s140
      %s142 = sphi 0, %s140
      %s143 = sphi 0, %s142
      %s157 = sphi 0, %s143
      %s161 = sphi 0, %s161
      %s163 = sphi 0, %s161
      %s164 = sphi 0, %s163
      %s178 = sphi 0, %s164
      %s182 = sphi 0, %s182
      %s184 = sphi 0, %s182
      %s185 = sphi 0, %s184
      %s199 = sphi 0, %s185
      %s203 = sphi 0, %s203
      %s205 = sphi 0, %s203
      %s206 = sphi 0, %s205
      %s220 = sphi 0, %s206
      %s226 = sphi 0, %s228
      %s229 = sphi 0, %s226
      %s230 = sphi 0, %s229
      %s246 = sphi 0, %s230
    $region4: #{tpu_custom_call.1} parent=1 // loop_header_branch
      %25 = sbr.rel (%p23) target = $region8
    $region5: #{tpu_custom_call.1} parent=1 // loop_body
      %s27 = ssub.s32 %s22, 1
      %s28 = ssub.s32 %s22, 2
      %s29 = sadd.s32 %s22, 1
      %s30 = ssub.s32 %s22, %s29
      %p31 = scmp.eq.s32.totalorder %s30, 0
      %s33 = sadd.s32 %s32, 1
      %s34 = scalar_select %p31, %s32, %s33
      %p37 = pneg %p31
      %p38 = scmp.eq.s32.totalorder %s22, 1
      %p39 = por %p37, %p38
      %p40 = scmp.ne.s32.totalorder %s32, %s35
      %p41 = scmp.eq.s32.totalorder %s22, 0
      %p42 = por %p40, %p41
      %p43 = scmp.ne.s32.totalorder %s32, %s35
      %p44 = scmp.eq.s32.totalorder %s27, 1
      %p45 = por %p43, %p44
      %p46 = scmp.ne.s32.totalorder %s35, %s36
      %p47 = scmp.eq.s32.totalorder %s27, 0
      %p48 = por %p46, %p47
      %p49 = scmp.ne.s32.totalorder %s35, %s36
      %p50 = scmp.eq.s32.totalorder %s28, 1
      %p51 = por %p49, %p50
      %p53 = scmp.ne.s32.totalorder %s36, %s52
      %p54 = scmp.eq.s32.totalorder %s28, 0
      %p55 = por %p53, %p54
      %s57 = sadd.s32 %s56, 1
      %p60 = scmp.eq.s32.totalorder %s22, 1
      %p61 = scmp.ne.s32.totalorder %s56, %s58
      %p62 = scmp.eq.s32.totalorder %s22, 0
      %p63 = por %p61, %p62
      %p64 = scmp.ne.s32.totalorder %s56, %s58
      %p65 = scmp.eq.s32.totalorder %s27, 1
      %p66 = por %p64, %p65
      %p67 = scmp.ne.s32.totalorder %s58, %s59
      %p68 = scmp.eq.s32.totalorder %s27, 0
      %p69 = por %p67, %p68
      %p70 = scmp.ne.s32.totalorder %s58, %s59
      %p71 = scmp.eq.s32.totalorder %s28, 1
      %p72 = por %p70, %p71
      %p74 = scmp.ne.s32.totalorder %s59, %s73
      %p75 = scmp.eq.s32.totalorder %s28, 0
      %p76 = por %p74, %p75
      %s78 = sadd.s32 %s77, 1
      %p81 = scmp.eq.s32.totalorder %s22, 1
      %p82 = scmp.ne.s32.totalorder %s77, %s79
      %p83 = scmp.eq.s32.totalorder %s22, 0
      %p84 = por %p82, %p83
      %p85 = scmp.ne.s32.totalorder %s77, %s79
      %p86 = scmp.eq.s32.totalorder %s27, 1
      %p87 = por %p85, %p86
      %p88 = scmp.ne.s32.totalorder %s79, %s80
      %p89 = scmp.eq.s32.totalorder %s27, 0
      %p90 = por %p88, %p89
      %p91 = scmp.ne.s32.totalorder %s79, %s80
      %p92 = scmp.eq.s32.totalorder %s28, 1
      %p93 = por %p91, %p92
      %p95 = scmp.ne.s32.totalorder %s80, %s94
      %p96 = scmp.eq.s32.totalorder %s28, 0
      %p97 = por %p95, %p96
      %s99 = sadd.s32 %s98, 1
      %p102 = scmp.eq.s32.totalorder %s22, 1
      %p103 = scmp.ne.s32.totalorder %s98, %s100
      %p104 = scmp.eq.s32.totalorder %s22, 0
      %p105 = por %p103, %p104
      %p106 = scmp.ne.s32.totalorder %s98, %s100
      %p107 = scmp.eq.s32.totalorder %s27, 1
      %p108 = por %p106, %p107
      %p109 = scmp.ne.s32.totalorder %s100, %s101
      %p110 = scmp.eq.s32.totalorder %s27, 0
      %p111 = por %p109, %p110
      %p112 = scmp.ne.s32.totalorder %s100, %s101
      %p113 = scmp.eq.s32.totalorder %s28, 1
      %p114 = por %p112, %p113
      %p116 = scmp.ne.s32.totalorder %s101, %s115
      %p117 = scmp.eq.s32.totalorder %s28, 0
      %p118 = por %p116, %p117
      %s120 = sadd.s32 %s119, 1
      %p123 = scmp.eq.s32.totalorder %s22, 1
      %p124 = scmp.ne.s32.totalorder %s119, %s121
      %p125 = scmp.eq.s32.totalorder %s22, 0
      %p126 = por %p124, %p125
      %p127 = scmp.ne.s32.totalorder %s119, %s121
      %p128 = scmp.eq.s32.totalorder %s27, 1
      %p129 = por %p127, %p128
      %p130 = scmp.ne.s32.totalorder %s121, %s122
      %p131 = scmp.eq.s32.totalorder %s27, 0
      %p132 = por %p130, %p131
      %p133 = scmp.ne.s32.totalorder %s121, %s122
      %p134 = scmp.eq.s32.totalorder %s28, 1
      %p135 = por %p133, %p134
      %p137 = scmp.ne.s32.totalorder %s122, %s136
      %p138 = scmp.eq.s32.totalorder %s28, 0
      %p139 = por %p137, %p138
      %s141 = sadd.s32 %s140, 1
      %p144 = scmp.eq.s32.totalorder %s22, 1
      %p145 = scmp.ne.s32.totalorder %s140, %s142
      %p146 = scmp.eq.s32.totalorder %s22, 0
      %p147 = por %p145, %p146
      %p148 = scmp.ne.s32.totalorder %s140, %s142
      %p149 = scmp.eq.s32.totalorder %s27, 1
      %p150 = por %p148, %p149
      %p151 = scmp.ne.s32.totalorder %s142, %s143
      %p152 = scmp.eq.s32.totalorder %s27, 0
      %p153 = por %p151, %p152
      %p154 = scmp.ne.s32.totalorder %s142, %s143
      %p155 = scmp.eq.s32.totalorder %s28, 1
      %p156 = por %p154, %p155
      %p158 = scmp.ne.s32.totalorder %s143, %s157
      %p159 = scmp.eq.s32.totalorder %s28, 0
      %p160 = por %p158, %p159
      %s162 = sadd.s32 %s161, 1
      %p165 = scmp.eq.s32.totalorder %s22, 1
      %p166 = scmp.ne.s32.totalorder %s161, %s163
      %p167 = scmp.eq.s32.totalorder %s22, 0
      %p168 = por %p166, %p167
      %p169 = scmp.ne.s32.totalorder %s161, %s163
      %p170 = scmp.eq.s32.totalorder %s27, 1
      %p171 = por %p169, %p170
      %p172 = scmp.ne.s32.totalorder %s163, %s164
      %p173 = scmp.eq.s32.totalorder %s27, 0
      %p174 = por %p172, %p173
      %p175 = scmp.ne.s32.totalorder %s163, %s164
      %p176 = scmp.eq.s32.totalorder %s28, 1
      %p177 = por %p175, %p176
      %p179 = scmp.ne.s32.totalorder %s164, %s178
      %p180 = scmp.eq.s32.totalorder %s28, 0
      %p181 = por %p179, %p180
      %s183 = sadd.s32 %s182, 1
      %p186 = scmp.eq.s32.totalorder %s22, 1
      %p187 = scmp.ne.s32.totalorder %s182, %s184
      %p188 = scmp.eq.s32.totalorder %s22, 0
      %p189 = por %p187, %p188
      %p190 = scmp.ne.s32.totalorder %s182, %s184
      %p191 = scmp.eq.s32.totalorder %s27, 1
      %p192 = por %p190, %p191
      %p193 = scmp.ne.s32.totalorder %s184, %s185
      %p194 = scmp.eq.s32.totalorder %s27, 0
      %p195 = por %p193, %p194
      %p196 = scmp.ne.s32.totalorder %s184, %s185
      %p197 = scmp.eq.s32.totalorder %s28, 1
      %p198 = por %p196, %p197
      %p200 = scmp.ne.s32.totalorder %s185, %s199
      %p201 = scmp.eq.s32.totalorder %s28, 0
      %p202 = por %p200, %p201
      %s204 = sadd.s32 %s203, 1
      %p207 = scmp.eq.s32.totalorder %s22, 1
      %p208 = scmp.ne.s32.totalorder %s203, %s205
      %p209 = scmp.eq.s32.totalorder %s22, 0
      %p210 = por %p208, %p209
      %p211 = scmp.ne.s32.totalorder %s203, %s205
      %p212 = scmp.eq.s32.totalorder %s27, 1
      %p213 = por %p211, %p212
      %p214 = scmp.ne.s32.totalorder %s205, %s206
      %p215 = scmp.eq.s32.totalorder %s27, 0
      %p216 = por %p214, %p215
      %p217 = scmp.ne.s32.totalorder %s205, %s206
      %p218 = scmp.eq.s32.totalorder %s28, 1
      %p219 = por %p217, %p218
      %p221 = scmp.ne.s32.totalorder %s206, %s220
      %p222 = scmp.eq.s32.totalorder %s28, 0
      %p223 = por %p221, %p222
      %s224 = ssub.s32 %s22, %s29
      %p225 = scmp.eq.s32.totalorder %s224, 0
      %s227 = sadd.s32 %s226, 1
      %s228 = scalar_select %p225, %s226, %s227
      %p231 = pneg %p225
      %p232 = scmp.eq.s32.totalorder %s22, 1
      %p233 = por %p231, %p232
      %p234 = scmp.ne.s32.totalorder %s226, %s229
      %p235 = scmp.eq.s32.totalorder %s22, 0
      %p236 = por %p234, %p235
      %p237 = scmp.ne.s32.totalorder %s226, %s229
      %p238 = scmp.eq.s32.totalorder %s27, 1
      %p239 = por %p237, %p238
      %p240 = scmp.ne.s32.totalorder %s229, %s230
      %p241 = scmp.eq.s32.totalorder %s27, 0
      %p242 = por %p240, %p241
      %p243 = scmp.ne.s32.totalorder %s229, %s230
      %p244 = scmp.eq.s32.totalorder %s28, 1
      %p245 = por %p243, %p244
      %p247 = scmp.ne.s32.totalorder %s230, %s246
      %p248 = scmp.eq.s32.totalorder %s28, 0
      %p249 = por %p247, %p248
      %p250 = scmp.le.s32.totalorder 1, %s22
      %p251 = scmp.lt.s32.totalorder %s22, 3
      %p252 = pnand %p250, %p251
      %p253 = pneg %p252
      // Predicated region
      $region9: #{tpu_custom_call.1} parent=5 // pred_check
        _
      $region10: #{tpu_custom_call.1} parent=5 // pred_check_branch
        %255 = sbr.rel (%p252) target = $region12
      $region11: #{tpu_custom_call.1} parent=5 // pred_region
        %s256 = ssub.s32 %s22, 1
        // Predicated region
        $region13: #{tpu_custom_call.1} parent=11 // pred_check
          %p257 = pneg %p69
        $region14: #{tpu_custom_call.1} parent=11 // pred_check_branch
          %259 = sbr.rel (%p257) target = $region16
        $region15: #{tpu_custom_call.1} parent=11 // pred_region
          _
        $region16: #{tpu_custom_call.1} parent=11 // pred_fallthru
          _
        // Predicated region
        $region17: #{tpu_custom_call.1} parent=11 // pred_check
          %p260 = pneg %p90
        $region18: #{tpu_custom_call.1} parent=11 // pred_check_branch
          %262 = sbr.rel (%p260) target = $region20
        $region19: #{tpu_custom_call.1} parent=11 // pred_region
          _
        $region20: #{tpu_custom_call.1} parent=11 // pred_fallthru
          _
        // Predicated region
        $region21: #{tpu_custom_call.1} parent=11 // pred_check
          %p263 = pneg %p111
        $region22: #{tpu_custom_call.1} parent=11 // pred_check_branch
          %265 = sbr.rel (%p263) target = $region24
        $region23: #{tpu_custom_call.1} parent=11 // pred_region
          _
        $region24: #{tpu_custom_call.1} parent=11 // pred_fallthru
          _
        // Predicated region
        $region25: #{tpu_custom_call.1} parent=11 // pred_check
          %p266 = pneg %p132
        $region26: #{tpu_custom_call.1} parent=11 // pred_check_branch
          %268 = sbr.rel (%p266) target = $region28
        $region27: #{tpu_custom_call.1} parent=11 // pred_region
          _
        $region28: #{tpu_custom_call.1} parent=11 // pred_fallthru
          _
        // Predicated region
        $region29: #{tpu_custom_call.1} parent=11 // pred_check
          %p269 = pneg %p153
        $region30: #{tpu_custom_call.1} parent=11 // pred_check_branch
          %271 = sbr.rel (%p269) target = $region32
        $region31: #{tpu_custom_call.1} parent=11 // pred_region
          _
        $region32: #{tpu_custom_call.1} parent=11 // pred_fallthru
          _
        // Predicated region
        $region33: #{tpu_custom_call.1} parent=11 // pred_check
          %p272 = pneg %p174
        $region34: #{tpu_custom_call.1} parent=11 // pred_check_branch
          %274 = sbr.rel (%p272) target = $region36
        $region35: #{tpu_custom_call.1} parent=11 // pred_region
          %s276 = ssub.s32 512, 512
          %277 = vsyncadd [#allocation6], %s276
          %s278 = sshll.u32 [#allocation5], 4
          %s279 = int_to_ptr.vmem [resolvable:$true] %s278
          %284 = dma.hbm_to_vmem [thread:$0]  %s6, 512, %s279, [#allocation6], 128, 128, 8
        $region36: #{tpu_custom_call.1} parent=11 // pred_fallthru
          _
        // Predicated region
        $region37: #{tpu_custom_call.1} parent=11 // pred_check
          %p285 = pneg %p195
        $region38: #{tpu_custom_call.1} parent=11 // pred_check_branch
          %287 = sbr.rel (%p285) target = $region40
        $region39: #{tpu_custom_call.1} parent=11 // pred_region
          %s289 = ssub.s32 512, 512
          %290 = vsyncadd [#allocation6], %s289
          %s291 = sshll.u32 [#allocation7], 4
          %s292 = int_to_ptr.vmem [resolvable:$true] %s291
          %297 = dma.hbm_to_vmem [thread:$0]  %s7, 512, %s292, [#allocation6], 128, 128, 8
        $region40: #{tpu_custom_call.1} parent=11 // pred_fallthru
          _
        // Predicated region
        $region41: #{tpu_custom_call.1} parent=11 // pred_check
          %p298 = pneg %p216
        $region42: #{tpu_custom_call.1} parent=11 // pred_check_branch
          %300 = sbr.rel (%p298) target = $region44
        $region43: #{tpu_custom_call.1} parent=11 // pred_region
          _
        $region44: #{tpu_custom_call.1} parent=11 // pred_fallthru
          _
      $region12: #{tpu_custom_call.1} parent=5 // pred_fallthru
        _
      %p301 = scmp.lt.s32.totalorder %s22, 2
      // Predicated region
      $region45: #{tpu_custom_call.1} parent=5 // pred_check
        %p302 = pneg %p301
      $region46: #{tpu_custom_call.1} parent=5 // pred_check_branch
        %304 = sbr.rel (%p302) target = $region48
      $region47: #{tpu_custom_call.1} parent=5 // pred_region
        // Predicated region
        $region49: #{tpu_custom_call.1} parent=47 // pred_check
          %p305 = pneg %p42
        $region50: #{tpu_custom_call.1} parent=47 // pred_check_branch
          %307 = sbr.rel (%p305) target = $region52
        $region51: #{tpu_custom_call.1} parent=47 // pred_region
          %s308 = sand.u32 %s32, 1
          %s309 = scalar_lea.sflag [#allocation3], %s308
          %s310 = sand.u32 %s32, 1
          %s311 = smul.addr %s310, 8
          %s312 = scalar_lea.vmem [#allocation2], %s311
          %s314 = ssub.s32 128, 128
          %315 = vsyncadd %s309, %s314
          %s316 = smul.addr %s22, 128
          %s317 = scalar_lea.hbm %s0, %s316
          %s319 = sshll.u32 %s312, 4
          %s320 = int_to_ptr.vmem [resolvable:$true] %s319
          %322 = dma.hbm_to_vmem [thread:$0]  %s317, 128, %s320, %s309
        $region52: #{tpu_custom_call.1} parent=47 // pred_fallthru
          _
      $region48: #{tpu_custom_call.1} parent=5 // pred_fallthru
        _
      %p323 = scmp.le.s32.totalorder 1, %s22
      %p324 = scmp.lt.s32.totalorder %s22, 3
      %p325 = pnand %p323, %p324
      %p326 = pneg %p325
      // Predicated region
      $region53: #{tpu_custom_call.1} parent=5 // pred_check
        _
      $region54: #{tpu_custom_call.1} parent=5 // pred_check_branch
        %328 = sbr.rel (%p325) target = $region56
      $region55: #{tpu_custom_call.1} parent=5 // pred_region
        %s329 = ssub.s32 %s22, 1
        %s330 = sand.u32 %s35, 1
        %s331 = scalar_lea.sflag [#allocation3], %s330
        %s332 = sand.u32 %s35, 1
        %s333 = smul.addr %s332, 8
        %s334 = scalar_lea.vmem [#allocation2], %s333
        // Predicated region
        $region57: #{tpu_custom_call.1} parent=55 // pred_check
          %p335 = pneg %p48
        $region58: #{tpu_custom_call.1} parent=55 // pred_check_branch
          %337 = sbr.rel (%p335) target = $region60
        $region59: #{tpu_custom_call.1} parent=55 // pred_region
          %338 = dma.done %s331, 128
        $region60: #{tpu_custom_call.1} parent=55 // pred_fallthru
          _
        // Predicated region
        $region61: #{tpu_custom_call.1} parent=55 // pred_check
          %p339 = pneg %p174
        $region62: #{tpu_custom_call.1} parent=55 // pred_check_branch
          %341 = sbr.rel (%p339) target = $region64
        $region63: #{tpu_custom_call.1} parent=55 // pred_region
          %342 = dma.done [#allocation6], 512
        $region64: #{tpu_custom_call.1} parent=55 // pred_fallthru
          _
        // Predicated region
        $region65: #{tpu_custom_call.1} parent=55 // pred_check
          %p343 = pneg %p195
        $region66: #{tpu_custom_call.1} parent=55 // pred_check_branch
          %345 = sbr.rel (%p343) target = $region68
        $region67: #{tpu_custom_call.1} parent=55 // pred_region
          %346 = dma.done [#allocation6], 512
        $region68: #{tpu_custom_call.1} parent=55 // pred_fallthru
          _
        %s347 = sand.u32 %s35, 1
        %s348 = scalar_lea.sflag [#allocation3], %s347
        %s349 = sand.u32 %s35, 1
        %s350 = smul.addr %s349, 8
        %s351 = scalar_lea.vmem [#allocation2], %s350
        %p352 = pneg %p48
        %p353 = pneg %p45
        %p354 = pneg %p69
        %p355 = pneg %p66
        %p356 = pneg %p90
        %p357 = pneg %p87
        %p358 = pneg %p111
        %p359 = pneg %p108
        %p360 = pneg %p132
        %p361 = pneg %p129
        %p362 = pneg %p153
        %p363 = pneg %p150
        %p364 = pneg %p174
        %p365 = pneg %p171
        %p366 = pneg %p195
        %p367 = pneg %p192
        %p368 = pneg %p216
        %p369 = pneg %p213
        %p370 = pneg %p242
        %p371 = pneg %p239
        %s372 = sand.u32 %s229, 1
        %s373 = scalar_lea.sflag [#allocation4], %s372
        %s374 = sand.u32 %s229, 1
        %s375 = smul.addr %s374, 8
        %s376 = scalar_lea.vmem [#allocation8], %s375
        %v377 = vld [vmem:[%s334] sm:$0xff]
        %v378 = vld [vmem:[%s1] sm:$0x1]
        %v379 = vmul.f32 %v377, %v377
        %vm380 = vcmask 261120
        %v381 = vsel %vm380, %v379, 0.0
        %382 = vadd.xlane.f32.xlu0 %v381
        %v383 = vpop.xlane.xlu0 %382
        %v384 = vrcp.pop 32.0
        %v385 = vmul.f32 %v383, %v384
        %v386 = vadd.f32 %v385, 1.1920929e-07
        %v387 = vrsqrt.pop %v386
        %v388 = vmul.f32 %v377, %v387
        %v390 = vlaneseq
        %v391 = vshrl.u32 %v390, 7
        %v392 = vsub.s32 0, %v391
        %v393 = vrot.slane %v378, %v392
        %v395 = vmul.f32 %v388, %v393
        %v396 = vld [vmem:[%s3] sm:$0xff]
        %v397 = vld [vmem:[%s3 + $0x8] sm:$0xff]
        %v398 = vld [vmem:[%s3 + $0x10] sm:$0xff]
        %v399 = vld [vmem:[%s3 + $0x18] sm:$0xff]
        %v401 = vsel %vm380, %v395, 0
        %403 = vmatprep.subr.mxu0 0.0
        %404 = vmatpush1.msra.mxu0 0.0
        %405 = vmatprep.subr.mxu0 0.0
        %406 = vmatpush1.msra.mxu0 0.0
        %407 = vmatprep.subr.mxu0 0.0
        %408 = vmatpush1.msra.mxu0 0.0
        %409 = vmatprep.subr.mxu0 0.0
        %410 = vmatpush1.msra.mxu0 0.0
        %411 = vmatprep.subr.mxu0 0.0
        %412 = vmatpush1.msra.mxu0 0.0
        %413 = vmatprep.subr.mxu0 0.0
        %414 = vmatpush1.msra.mxu0 0.0
        %415 = vmatprep.subr.mxu0 0.0
        %416 = vmatpush1.msra.mxu0 0.0
        %417 = vmatprep.subr.mxu0 0.0
        %418 = vmatpush1.msra.mxu0 0.0
        %419 = vmatprep.subr.mxu0 0.0
        %420 = vmatpush1.msra.mxu0 0.0
        %421 = vmatprep.subr.mxu0 0.0
        %422 = vmatpush1.msra.mxu0 0.0
        %423 = vmatprep.subr.mxu0 0.0
        %424 = vmatpush1.msra.mxu0 0.0
        %425 = vmatprep.subr.mxu0 0.0
        %426 = vmatpush1.msra.mxu0 0.0
        %427 = vmatprep.subr.mxu0 0.0
        %428 = vmatpush1.msra.mxu0 %v399
        %429 = vmatprep.subr.mxu0 0.0
        %430 = vmatpush1.msra.mxu0 %v398
        %431 = vmatprep.subr.mxu0 0.0
        %432 = vmatpush1.msra.mxu0 %v397
        %433 = vmatprep.subr.mxu0 0.0
        %434 = vmatpush1.msra.mxu0 %v396
        %435 = vmatprep.subr.mxu0 0.0
        %436 = vmatpush2.msra.mxu0 0.0
        %437 = vmatprep.subr.mxu0 0.0
        %438 = vmatpush2.msra.mxu0 0.0
        %439 = vmatprep.subr.mxu0 0.0
        %440 = vmatpush2.msra.mxu0 0.0
        %441 = vmatprep.subr.mxu0 0.0
        %442 = vmatpush2.msra.mxu0 0.0
        %443 = vmatprep.subr.mxu0 0.0
        %444 = vmatpush2.msra.mxu0 0.0
        %445 = vmatprep.subr.mxu0 0.0
        %446 = vmatpush2.msra.mxu0 0.0
        %447 = vmatprep.subr.mxu0 0.0
        %448 = vmatpush2.msra.mxu0 0.0
        %449 = vmatprep.subr.mxu0 0.0
        %450 = vmatpush2.msra.mxu0 0.0
        %451 = vmatprep.subr.mxu0 0.0
        %452 = vmatpush2.msra.mxu0 0.0
        %453 = vmatprep.subr.mxu0 0.0
        %454 = vmatpush2.msra.mxu0 0.0
        %455 = vmatprep.subr.mxu0 0.0
        %456 = vmatpush2.msra.mxu0 0.0
        %457 = vmatprep.subr.mxu0 0.0
        %458 = vmatpush2.msra.mxu0 0.0
        %459 = vmatprep.subr.mxu0 0.0
        %460 = vmatpush2.msra.mxu0 0.0
        %461 = vmatprep.subr.mxu0 0.0
        %462 = vmatpush2.msra.mxu0 0.0
        %463 = vmatprep.subr.mxu0 0.0
        %464 = vmatpush2.msra.mxu0 0.0
        %465 = vmatprep.subr.mxu0 0.0
        %466 = vmatpush2.msra.mxu0 0.0
        %467 = vmatprep.mubr.f32.mxu0 0.0
        %468 = vmatmul.mubr.f32.gmra.mxu0 %v401
        %v469 = vpop.f32.mrf.mxu0
        %v470 = vadd.f32 0.0, %v469
        %v471 = vpop.f32.mrf.mxu0
        %472 = vdwg.mxu0
        %v473 = vld [vmem:[%s4] sm:$0xff]
        %v474 = vld [vmem:[%s4 + $0x8] sm:$0xff]
        %v475 = vld [vmem:[%s4 + $0x10] sm:$0xff]
        %v476 = vld [vmem:[%s4 + $0x18] sm:$0xff]
        %477 = vmatprep.subr.mxu0 0.0
        %478 = vmatpush1.msra.mxu0 0.0
        %479 = vmatprep.subr.mxu0 0.0
        %480 = vmatpush1.msra.mxu0 0.0
        %481 = vmatprep.subr.mxu0 0.0
        %482 = vmatpush1.msra.mxu0 0.0
        %483 = vmatprep.subr.mxu0 0.0
        %484 = vmatpush1.msra.mxu0 0.0
        %485 = vmatprep.subr.mxu0 0.0
        %486 = vmatpush1.msra.mxu0 0.0
        %487 = vmatprep.subr.mxu0 0.0
        %488 = vmatpush1.msra.mxu0 0.0
        %489 = vmatprep.subr.mxu0 0.0
        %490 = vmatpush1.msra.mxu0 0.0
        %491 = vmatprep.subr.mxu0 0.0
        %492 = vmatpush1.msra.mxu0 0.0
        %493 = vmatprep.subr.mxu0 0.0
        %494 = vmatpush1.msra.mxu0 0.0
        %495 = vmatprep.subr.mxu0 0.0
        %496 = vmatpush1.msra.mxu0 0.0
        %497 = vmatprep.subr.mxu0 0.0
        %498 = vmatpush1.msra.mxu0 0.0
        %499 = vmatprep.subr.mxu0 0.0
        %500 = vmatpush1.msra.mxu0 0.0
        %501 = vmatprep.subr.mxu0 0.0
        %502 = vmatpush1.msra.mxu0 %v476
        %503 = vmatprep.subr.mxu0 0.0
        %504 = vmatpush1.msra.mxu0 %v475
        %505 = vmatprep.subr.mxu0 0.0
        %506 = vmatpush1.msra.mxu0 %v474
        %507 = vmatprep.subr.mxu0 0.0
        %508 = vmatpush1.msra.mxu0 %v473
        %509 = vmatprep.subr.mxu0 0.0
        %510 = vmatpush2.msra.mxu0 0.0
        %511 = vmatprep.subr.mxu0 0.0
        %512 = vmatpush2.msra.mxu0 0.0
        %513 = vmatprep.subr.mxu0 0.0
        %514 = vmatpush2.msra.mxu0 0.0
        %515 = vmatprep.subr.mxu0 0.0
        %516 = vmatpush2.msra.mxu0 0.0
        %517 = vmatprep.subr.mxu0 0.0
        %518 = vmatpush2.msra.mxu0 0.0
        %519 = vmatprep.subr.mxu0 0.0
        %520 = vmatpush2.msra.mxu0 0.0
        %521 = vmatprep.subr.mxu0 0.0
        %522 = vmatpush2.msra.mxu0 0.0
        %523 = vmatprep.subr.mxu0 0.0
        %524 = vmatpush2.msra.mxu0 0.0
        %525 = vmatprep.subr.mxu0 0.0
        %526 = vmatpush2.msra.mxu0 0.0
        %527 = vmatprep.subr.mxu0 0.0
        %528 = vmatpush2.msra.mxu0 0.0
        %529 = vmatprep.subr.mxu0 0.0
        %530 = vmatpush2.msra.mxu0 0.0
        %531 = vmatprep.subr.mxu0 0.0
        %532 = vmatpush2.msra.mxu0 0.0
        %533 = vmatprep.subr.mxu0 0.0
        %534 = vmatpush2.msra.mxu0 0.0
        %535 = vmatprep.subr.mxu0 0.0
        %536 = vmatpush2.msra.mxu0 0.0
        %537 = vmatprep.subr.mxu0 0.0
        %538 = vmatpush2.msra.mxu0 0.0
        %539 = vmatprep.subr.mxu0 0.0
        %540 = vmatpush2.msra.mxu0 0.0
        %541 = vmatprep.mubr.f32.mxu0 0.0
        %542 = vmatmul.mubr.f32.gmra.mxu0 %v401
        %v543 = vpop.f32.mrf.mxu0
        %v544 = vadd.f32 0.0, %v543
        %v545 = vpop.f32.mrf.mxu0
        %546 = vdwg.mxu0
        %v547 = vld [vmem:[%s5] sm:$0xff]
        %v548 = vld [vmem:[%s5 + $0x8] sm:$0xff]
        %v549 = vld [vmem:[%s5 + $0x10] sm:$0xff]
        %v550 = vld [vmem:[%s5 + $0x18] sm:$0xff]
        %551 = vmatprep.subr.mxu0 0.0
        %552 = vmatpush1.msra.mxu0 0.0
        %553 = vmatprep.subr.mxu0 0.0
        %554 = vmatpush1.msra.mxu0 0.0
        %555 = vmatprep.subr.mxu0 0.0
        %556 = vmatpush1.msra.mxu0 0.0
        %557 = vmatprep.subr.mxu0 0.0
        %558 = vmatpush1.msra.mxu0 0.0
        %559 = vmatprep.subr.mxu0 0.0
        %560 = vmatpush1.msra.mxu0 0.0
        %561 = vmatprep.subr.mxu0 0.0
        %562 = vmatpush1.msra.mxu0 0.0
        %563 = vmatprep.subr.mxu0 0.0
        %564 = vmatpush1.msra.mxu0 0.0
        %565 = vmatprep.subr.mxu0 0.0
        %566 = vmatpush1.msra.mxu0 0.0
        %567 = vmatprep.subr.mxu0 0.0
        %568 = vmatpush1.msra.mxu0 0.0
        %569 = vmatprep.subr.mxu0 0.0
        %570 = vmatpush1.msra.mxu0 0.0
        %571 = vmatprep.subr.mxu0 0.0
        %572 = vmatpush1.msra.mxu0 0.0
        %573 = vmatprep.subr.mxu0 0.0
        %574 = vmatpush1.msra.mxu0 0.0
        %575 = vmatprep.subr.mxu0 0.0
        %576 = vmatpush1.msra.mxu0 %v550
        %577 = vmatprep.subr.mxu0 0.0
        %578 = vmatpush1.msra.mxu0 %v549
        %579 = vmatprep.subr.mxu0 0.0
        %580 = vmatpush1.msra.mxu0 %v548
        %581 = vmatprep.subr.mxu0 0.0
        %582 = vmatpush1.msra.mxu0 %v547
        %583 = vmatprep.subr.mxu0 0.0
        %584 = vmatpush2.msra.mxu0 0.0
        %585 = vmatprep.subr.mxu0 0.0
        %586 = vmatpush2.msra.mxu0 0.0
        %587 = vmatprep.subr.mxu0 0.0
        %588 = vmatpush2.msra.mxu0 0.0
        %589 = vmatprep.subr.mxu0 0.0
        %590 = vmatpush2.msra.mxu0 0.0
        %591 = vmatprep.subr.mxu0 0.0
        %592 = vmatpush2.msra.mxu0 0.0
        %593 = vmatprep.subr.mxu0 0.0
        %594 = vmatpush2.msra.mxu0 0.0
        %595 = vmatprep.subr.mxu0 0.0
        %596 = vmatpush2.msra.mxu0 0.0
        %597 = vmatprep.subr.mxu0 0.0
        %598 = vmatpush2.msra.mxu0 0.0
        %599 = vmatprep.subr.mxu0 0.0
        %600 = vmatpush2.msra.mxu0 0.0
        %601 = vmatprep.subr.mxu0 0.0
        %602 = vmatpush2.msra.mxu0 0.0
        %603 = vmatprep.subr.mxu0 0.0
        %604 = vmatpush2.msra.mxu0 0.0
        %605 = vmatprep.subr.mxu0 0.0
        %606 = vmatpush2.msra.mxu0 0.0
        %607 = vmatprep.subr.mxu0 0.0
        %608 = vmatpush2.msra.mxu0 0.0
        %609 = vmatprep.subr.mxu0 0.0
        %610 = vmatpush2.msra.mxu0 0.0
        %611 = vmatprep.subr.mxu0 0.0
        %612 = vmatpush2.msra.mxu0 0.0
        %613 = vmatprep.subr.mxu0 0.0
        %614 = vmatpush2.msra.mxu0 0.0
        %615 = vmatprep.mubr.f32.mxu0 0.0
        %616 = vmatmul.mubr.f32.gmra.mxu0 %v401
        %v617 = vpop.f32.mrf.mxu0
        %v618 = vadd.f32 0.0, %v617
        %v619 = vpop.f32.mrf.mxu0
        %620 = vdwg.mxu0
        %622 = vrot.lane.b32.xlu0 %v470, 120
        %v623 = vpop.permute.xlu0 %622
        %624 = vrot.lane.b32.xlu0 %v470, 112
        %v625 = vpop.permute.xlu0 %624
        %626 = vrot.lane.b32.xlu0 %v470, 104
        %v627 = vpop.permute.xlu0 %626
        %629 = vrot.lane.b32.xlu0 %v544, 120
        %v630 = vpop.permute.xlu0 %629
        %631 = vrot.lane.b32.xlu0 %v544, 112
        %v632 = vpop.permute.xlu0 %631
        %633 = vrot.lane.b32.xlu0 %v544, 104
        %v634 = vpop.permute.xlu0 %633
        %636 = vrot.lane.b32.xlu0 %v618, 120
        %v637 = vpop.permute.xlu0 %636
        %639 = vrot.lane.b32.xlu0 %v618, 112
        %v640 = vpop.permute.xlu0 %639
        %642 = vrot.lane.b32.xlu0 %v618, 104
        %v643 = vpop.permute.xlu0 %642
        %vm645 = vcmask 64512
        %v646 = vsel %vm645, %v470, 0
        %v648 = vsel %vm645, %v544, 0
        %650 = vmatprep.subr.mxu0 0.0
        %651 = vmatpush1.xpose.msra.mxu0 0.0
        %652 = vmatprep.subr.mxu0 0.0
        %653 = vmatpush1.xpose.msra.mxu0 0.0
        %654 = vmatprep.subr.mxu0 0.0
        %655 = vmatpush1.xpose.msra.mxu0 0.0
        %656 = vmatprep.subr.mxu0 0.0
        %657 = vmatpush1.xpose.msra.mxu0 0.0
        %658 = vmatprep.subr.mxu0 0.0
        %659 = vmatpush1.xpose.msra.mxu0 0.0
        %660 = vmatprep.subr.mxu0 0.0
        %661 = vmatpush1.xpose.msra.mxu0 0.0
        %662 = vmatprep.subr.mxu0 0.0
        %663 = vmatpush1.xpose.msra.mxu0 0.0
        %664 = vmatprep.subr.mxu0 0.0
        %665 = vmatpush1.xpose.msra.mxu0 0.0
        %666 = vmatprep.subr.mxu0 0.0
        %667 = vmatpush1.xpose.msra.mxu0 0.0
        %668 = vmatprep.subr.mxu0 0.0
        %669 = vmatpush1.xpose.msra.mxu0 0.0
        %670 = vmatprep.subr.mxu0 0.0
        %671 = vmatpush1.xpose.msra.mxu0 0.0
        %672 = vmatprep.subr.mxu0 0.0
        %673 = vmatpush1.xpose.msra.mxu0 0.0
        %674 = vmatprep.subr.mxu0 0.0
        %675 = vmatpush1.xpose.msra.mxu0 0.0
        %676 = vmatprep.subr.mxu0 0.0
        %677 = vmatpush1.xpose.msra.mxu0 0.0
        %678 = vmatprep.subr.mxu0 0.0
        %679 = vmatpush1.xpose.msra.mxu0 0.0
        %680 = vmatprep.subr.mxu0 0.0
        %681 = vmatpush1.xpose.msra.mxu0 %v648
        %682 = vmatprep.subr.mxu0 0.0
        %683 = vmatpush2.xpose.msra.mxu0 0.0
        %684 = vmatprep.subr.mxu0 0.0
        %685 = vmatpush2.xpose.msra.mxu0 0.0
        %686 = vmatprep.subr.mxu0 0.0
        %687 = vmatpush2.xpose.msra.mxu0 0.0
        %688 = vmatprep.subr.mxu0 0.0
        %689 = vmatpush2.xpose.msra.mxu0 0.0
        %690 = vmatprep.subr.mxu0 0.0
        %691 = vmatpush2.xpose.msra.mxu0 0.0
        %692 = vmatprep.subr.mxu0 0.0
        %693 = vmatpush2.xpose.msra.mxu0 0.0
        %694 = vmatprep.subr.mxu0 0.0
        %695 = vmatpush2.xpose.msra.mxu0 0.0
        %696 = vmatprep.subr.mxu0 0.0
        %697 = vmatpush2.xpose.msra.mxu0 0.0
        %698 = vmatprep.subr.mxu0 0.0
        %699 = vmatpush2.xpose.msra.mxu0 0.0
        %700 = vmatprep.subr.mxu0 0.0
        %701 = vmatpush2.xpose.msra.mxu0 0.0
        %702 = vmatprep.subr.mxu0 0.0
        %703 = vmatpush2.xpose.msra.mxu0 0.0
        %704 = vmatprep.subr.mxu0 0.0
        %705 = vmatpush2.xpose.msra.mxu0 0.0
        %706 = vmatprep.subr.mxu0 0.0
        %707 = vmatpush2.xpose.msra.mxu0 0.0
        %708 = vmatprep.subr.mxu0 0.0
        %709 = vmatpush2.xpose.msra.mxu0 0.0
        %710 = vmatprep.subr.mxu0 0.0
        %711 = vmatpush2.xpose.msra.mxu0 0.0
        %712 = vmatprep.subr.mxu0 0.0
        %713 = vmatpush2.xpose.msra.mxu0 0.0
        %714 = vmatprep.mubr.f32.mxu0 0.0
        %715 = vmatmul.mubr.f32.gmra.mxu0 %v646
        %v716 = vpop.f32.mrf.mxu0
        %v717 = vadd.f32 0.0, %v716
        %v718 = vpop.f32.mrf.mxu0
        %719 = vdwg.mxu0
        %v720 = vsel %vm645, %v623, 0
        %v722 = vsel %vm645, %v630, 0
        %724 = vmatprep.subr.mxu0 0.0
        %725 = vmatpush1.xpose.msra.mxu0 0.0
        %726 = vmatprep.subr.mxu0 0.0
        %727 = vmatpush1.xpose.msra.mxu0 0.0
        %728 = vmatprep.subr.mxu0 0.0
        %729 = vmatpush1.xpose.msra.mxu0 0.0
        %730 = vmatprep.subr.mxu0 0.0
        %731 = vmatpush1.xpose.msra.mxu0 0.0
        %732 = vmatprep.subr.mxu0 0.0
        %733 = vmatpush1.xpose.msra.mxu0 0.0
        %734 = vmatprep.subr.mxu0 0.0
        %735 = vmatpush1.xpose.msra.mxu0 0.0
        %736 = vmatprep.subr.mxu0 0.0
        %737 = vmatpush1.xpose.msra.mxu0 0.0
        %738 = vmatprep.subr.mxu0 0.0
        %739 = vmatpush1.xpose.msra.mxu0 0.0
        %740 = vmatprep.subr.mxu0 0.0
        %741 = vmatpush1.xpose.msra.mxu0 0.0
        %742 = vmatprep.subr.mxu0 0.0
        %743 = vmatpush1.xpose.msra.mxu0 0.0
        %744 = vmatprep.subr.mxu0 0.0
        %745 = vmatpush1.xpose.msra.mxu0 0.0
        %746 = vmatprep.subr.mxu0 0.0
        %747 = vmatpush1.xpose.msra.mxu0 0.0
        %748 = vmatprep.subr.mxu0 0.0
        %749 = vmatpush1.xpose.msra.mxu0 0.0
        %750 = vmatprep.subr.mxu0 0.0
        %751 = vmatpush1.xpose.msra.mxu0 0.0
        %752 = vmatprep.subr.mxu0 0.0
        %753 = vmatpush1.xpose.msra.mxu0 0.0
        %754 = vmatprep.subr.mxu0 0.0
        %755 = vmatpush1.xpose.msra.mxu0 %v722
        %756 = vmatprep.subr.mxu0 0.0
        %757 = vmatpush2.xpose.msra.mxu0 0.0
        %758 = vmatprep.subr.mxu0 0.0
        %759 = vmatpush2.xpose.msra.mxu0 0.0
        %760 = vmatprep.subr.mxu0 0.0
        %761 = vmatpush2.xpose.msra.mxu0 0.0
        %762 = vmatprep.subr.mxu0 0.0
        %763 = vmatpush2.xpose.msra.mxu0 0.0
        %764 = vmatprep.subr.mxu0 0.0
        %765 = vmatpush2.xpose.msra.mxu0 0.0
        %766 = vmatprep.subr.mxu0 0.0
        %767 = vmatpush2.xpose.msra.mxu0 0.0
        %768 = vmatprep.subr.mxu0 0.0
        %769 = vmatpush2.xpose.msra.mxu0 0.0
        %770 = vmatprep.subr.mxu0 0.0
        %771 = vmatpush2.xpose.msra.mxu0 0.0
        %772 = vmatprep.subr.mxu0 0.0
        %773 = vmatpush2.xpose.msra.mxu0 0.0
        %774 = vmatprep.subr.mxu0 0.0
        %775 = vmatpush2.xpose.msra.mxu0 0.0
        %776 = vmatprep.subr.mxu0 0.0
        %777 = vmatpush2.xpose.msra.mxu0 0.0
        %778 = vmatprep.subr.mxu0 0.0
        %779 = vmatpush2.xpose.msra.mxu0 0.0
        %780 = vmatprep.subr.mxu0 0.0
        %781 = vmatpush2.xpose.msra.mxu0 0.0
        %782 = vmatprep.subr.mxu0 0.0
        %783 = vmatpush2.xpose.msra.mxu0 0.0
        %784 = vmatprep.subr.mxu0 0.0
        %785 = vmatpush2.xpose.msra.mxu0 0.0
        %786 = vmatprep.subr.mxu0 0.0
        %787 = vmatpush2.xpose.msra.mxu0 0.0
        %788 = vmatprep.mubr.f32.mxu0 0.0
        %789 = vmatmul.mubr.f32.gmra.mxu0 %v720
        %v790 = vpop.f32.mrf.mxu0
        %v791 = vadd.f32 0.0, %v790
        %v792 = vpop.f32.mrf.mxu0
        %793 = vdwg.mxu0
        %v794 = vsel %vm645, %v625, 0
        %v796 = vsel %vm645, %v632, 0
        %798 = vmatprep.subr.mxu0 0.0
        %799 = vmatpush1.xpose.msra.mxu0 0.0
        %800 = vmatprep.subr.mxu0 0.0
        %801 = vmatpush1.xpose.msra.mxu0 0.0
        %802 = vmatprep.subr.mxu0 0.0
        %803 = vmatpush1.xpose.msra.mxu0 0.0
        %804 = vmatprep.subr.mxu0 0.0
        %805 = vmatpush1.xpose.msra.mxu0 0.0
        %806 = vmatprep.subr.mxu0 0.0
        %807 = vmatpush1.xpose.msra.mxu0 0.0
        %808 = vmatprep.subr.mxu0 0.0
        %809 = vmatpush1.xpose.msra.mxu0 0.0
        %810 = vmatprep.subr.mxu0 0.0
        %811 = vmatpush1.xpose.msra.mxu0 0.0
        %812 = vmatprep.subr.mxu0 0.0
        %813 = vmatpush1.xpose.msra.mxu0 0.0
        %814 = vmatprep.subr.mxu0 0.0
        %815 = vmatpush1.xpose.msra.mxu0 0.0
        %816 = vmatprep.subr.mxu0 0.0
        %817 = vmatpush1.xpose.msra.mxu0 0.0
        %818 = vmatprep.subr.mxu0 0.0
        %819 = vmatpush1.xpose.msra.mxu0 0.0
        %820 = vmatprep.subr.mxu0 0.0
        %821 = vmatpush1.xpose.msra.mxu0 0.0
        %822 = vmatprep.subr.mxu0 0.0
        %823 = vmatpush1.xpose.msra.mxu0 0.0
        %824 = vmatprep.subr.mxu0 0.0
        %825 = vmatpush1.xpose.msra.mxu0 0.0
        %826 = vmatprep.subr.mxu0 0.0
        %827 = vmatpush1.xpose.msra.mxu0 0.0
        %828 = vmatprep.subr.mxu0 0.0
        %829 = vmatpush1.xpose.msra.mxu0 %v796
        %830 = vmatprep.subr.mxu0 0.0
        %831 = vmatpush2.xpose.msra.mxu0 0.0
        %832 = vmatprep.subr.mxu0 0.0
        %833 = vmatpush2.xpose.msra.mxu0 0.0
        %834 = vmatprep.subr.mxu0 0.0
        %835 = vmatpush2.xpose.msra.mxu0 0.0
        %836 = vmatprep.subr.mxu0 0.0
        %837 = vmatpush2.xpose.msra.mxu0 0.0
        %838 = vmatprep.subr.mxu0 0.0
        %839 = vmatpush2.xpose.msra.mxu0 0.0
        %840 = vmatprep.subr.mxu0 0.0
        %841 = vmatpush2.xpose.msra.mxu0 0.0
        %842 = vmatprep.subr.mxu0 0.0
        %843 = vmatpush2.xpose.msra.mxu0 0.0
        %844 = vmatprep.subr.mxu0 0.0
        %845 = vmatpush2.xpose.msra.mxu0 0.0
        %846 = vmatprep.subr.mxu0 0.0
        %847 = vmatpush2.xpose.msra.mxu0 0.0
        %848 = vmatprep.subr.mxu0 0.0
        %849 = vmatpush2.xpose.msra.mxu0 0.0
        %850 = vmatprep.subr.mxu0 0.0
        %851 = vmatpush2.xpose.msra.mxu0 0.0
        %852 = vmatprep.subr.mxu0 0.0
        %853 = vmatpush2.xpose.msra.mxu0 0.0
        %854 = vmatprep.subr.mxu0 0.0
        %855 = vmatpush2.xpose.msra.mxu0 0.0
        %856 = vmatprep.subr.mxu0 0.0
        %857 = vmatpush2.xpose.msra.mxu0 0.0
        %858 = vmatprep.subr.mxu0 0.0
        %859 = vmatpush2.xpose.msra.mxu0 0.0
        %860 = vmatprep.subr.mxu0 0.0
        %861 = vmatpush2.xpose.msra.mxu0 0.0
        %862 = vmatprep.mubr.f32.mxu0 0.0
        %863 = vmatmul.mubr.f32.gmra.mxu0 %v794
        %v864 = vpop.f32.mrf.mxu0
        %v865 = vadd.f32 0.0, %v864
        %v866 = vpop.f32.mrf.mxu0
        %867 = vdwg.mxu0
        %v868 = vsel %vm645, %v627, 0
        %v870 = vsel %vm645, %v634, 0
        %872 = vmatprep.subr.mxu0 0.0
        %873 = vmatpush1.xpose.msra.mxu0 0.0
        %874 = vmatprep.subr.mxu0 0.0
        %875 = vmatpush1.xpose.msra.mxu0 0.0
        %876 = vmatprep.subr.mxu0 0.0
        %877 = vmatpush1.xpose.msra.mxu0 0.0
        %878 = vmatprep.subr.mxu0 0.0
        %879 = vmatpush1.xpose.msra.mxu0 0.0
        %880 = vmatprep.subr.mxu0 0.0
        %881 = vmatpush1.xpose.msra.mxu0 0.0
        %882 = vmatprep.subr.mxu0 0.0
        %883 = vmatpush1.xpose.msra.mxu0 0.0
        %884 = vmatprep.subr.mxu0 0.0
        %885 = vmatpush1.xpose.msra.mxu0 0.0
        %886 = vmatprep.subr.mxu0 0.0
        %887 = vmatpush1.xpose.msra.mxu0 0.0
        %888 = vmatprep.subr.mxu0 0.0
        %889 = vmatpush1.xpose.msra.mxu0 0.0
        %890 = vmatprep.subr.mxu0 0.0
        %891 = vmatpush1.xpose.msra.mxu0 0.0
        %892 = vmatprep.subr.mxu0 0.0
        %893 = vmatpush1.xpose.msra.mxu0 0.0
        %894 = vmatprep.subr.mxu0 0.0
        %895 = vmatpush1.xpose.msra.mxu0 0.0
        %896 = vmatprep.subr.mxu0 0.0
        %897 = vmatpush1.xpose.msra.mxu0 0.0
        %898 = vmatprep.subr.mxu0 0.0
        %899 = vmatpush1.xpose.msra.mxu0 0.0
        %900 = vmatprep.subr.mxu0 0.0
        %901 = vmatpush1.xpose.msra.mxu0 0.0
        %902 = vmatprep.subr.mxu0 0.0
        %903 = vmatpush1.xpose.msra.mxu0 %v870
        %904 = vmatprep.subr.mxu0 0.0
        %905 = vmatpush2.xpose.msra.mxu0 0.0
        %906 = vmatprep.subr.mxu0 0.0
        %907 = vmatpush2.xpose.msra.mxu0 0.0
        %908 = vmatprep.subr.mxu0 0.0
        %909 = vmatpush2.xpose.msra.mxu0 0.0
        %910 = vmatprep.subr.mxu0 0.0
        %911 = vmatpush2.xpose.msra.mxu0 0.0
        %912 = vmatprep.subr.mxu0 0.0
        %913 = vmatpush2.xpose.msra.mxu0 0.0
        %914 = vmatprep.subr.mxu0 0.0
        %915 = vmatpush2.xpose.msra.mxu0 0.0
        %916 = vmatprep.subr.mxu0 0.0
        %917 = vmatpush2.xpose.msra.mxu0 0.0
        %918 = vmatprep.subr.mxu0 0.0
        %919 = vmatpush2.xpose.msra.mxu0 0.0
        %920 = vmatprep.subr.mxu0 0.0
        %921 = vmatpush2.xpose.msra.mxu0 0.0
        %922 = vmatprep.subr.mxu0 0.0
        %923 = vmatpush2.xpose.msra.mxu0 0.0
        %924 = vmatprep.subr.mxu0 0.0
        %925 = vmatpush2.xpose.msra.mxu0 0.0
        %926 = vmatprep.subr.mxu0 0.0
        %927 = vmatpush2.xpose.msra.mxu0 0.0
        %928 = vmatprep.subr.mxu0 0.0
        %929 = vmatpush2.xpose.msra.mxu0 0.0
        %930 = vmatprep.subr.mxu0 0.0
        %931 = vmatpush2.xpose.msra.mxu0 0.0
        %932 = vmatprep.subr.mxu0 0.0
        %933 = vmatpush2.xpose.msra.mxu0 0.0
        %934 = vmatprep.subr.mxu0 0.0
        %935 = vmatpush2.xpose.msra.mxu0 0.0
        %936 = vmatprep.mubr.f32.mxu0 0.0
        %937 = vmatmul.mubr.f32.gmra.mxu0 %v868
        %v938 = vpop.f32.mrf.mxu0
        %v939 = vadd.f32 0.0, %v938
        %v940 = vpop.f32.mrf.mxu0
        %941 = vdwg.mxu0
        %v942 = vmul.f32 %v717, 0.35355338
        %v943 = vmul.f32 %v791, 0.35355338
        %v944 = vmul.f32 %v865, 0.35355338
        %v945 = vmul.f32 %v939, 0.35355338
        %v946 = vlaneseq
        %v947 = vshrl.u32 %v946, 7
        %v948 = vlaneseq
        %v949 = vand.u32 %v948, 127
        %vm950 = vcmp.ge.s32.totalorder %v947, %v949
        %v951 = vsel %vm950, 1, 0
        %vm952 = vcmp.eq.s32.totalorder %v951, 1
        %v953 = vsel %vm952, %v942, -1e+30
        %v954 = vsel %vm952, %v943, -1e+30
        %v955 = vsel %vm952, %v944, -1e+30
        %v956 = vsel %vm952, %v945, -1e+30
        %v957 = vsel %vm645, %v953, -inf
        %958 = vmax.xlane.f32.xlu0 %v957
        %v959 = vpop.xlane.xlu0 %958
        %v960 = vsel %vm645, %v954, -inf
        %961 = vmax.xlane.f32.xlu0 %v960
        %v962 = vpop.xlane.xlu0 %961
        %v963 = vsel %vm645, %v955, -inf
        %964 = vmax.xlane.f32.xlu0 %v963
        %v965 = vpop.xlane.xlu0 %964
        %v966 = vsel %vm645, %v956, -inf
        %967 = vmax.xlane.f32.xlu0 %v966
        %v968 = vpop.xlane.xlu0 %967
        %v969 = vmax.f32 %v959, -1e+30
        %v970 = vmax.f32 %v962, -1e+30
        %v971 = vmax.f32 %v965, -1e+30
        %v972 = vmax.f32 %v968, -1e+30
        %v973 = vsub.f32 -1e+30, %v969
        %v974 = vsub.f32 -1e+30, %v970
        %v975 = vsub.f32 -1e+30, %v971
        %v976 = vsub.f32 -1e+30, %v972
        %v977 = vmul.f32 %v973, 1.442695
        %v978 = vpow.pop %v977
        %v979 = vmul.f32 %v974, 1.442695
        %v980 = vpow.pop %v979
        %v981 = vmul.f32 %v975, 1.442695
        %v982 = vpow.pop %v981
        %v983 = vmul.f32 %v976, 1.442695
        %v984 = vpow.pop %v983
        %v985 = vsub.f32 %v953, %v969
        %v986 = vsub.f32 %v954, %v970
        %v987 = vsub.f32 %v955, %v971
        %v988 = vsub.f32 %v956, %v972
        %v989 = vmul.f32 %v985, 1.442695
        %v990 = vpow.pop %v989
        %v991 = vmul.f32 %v986, 1.442695
        %v992 = vpow.pop %v991
        %v993 = vmul.f32 %v987, 1.442695
        %v994 = vpow.pop %v993
        %v995 = vmul.f32 %v988, 1.442695
        %v996 = vpow.pop %v995
        %v997 = vmul.f32 %v978, 0.0
        %v998 = vmul.f32 %v980, 0.0
        %v999 = vmul.f32 %v982, 0.0
        %v1000 = vmul.f32 %v984, 0.0
        %v1001 = vsel %vm645, %v990, 0.0
        %1002 = vadd.xlane.f32.xlu0 %v1001
        %v1003 = vpop.xlane.xlu0 %1002
        %v1004 = vsel %vm645, %v992, 0.0
        %1005 = vadd.xlane.f32.xlu0 %v1004
        %v1006 = vpop.xlane.xlu0 %1005
        %v1007 = vsel %vm645, %v994, 0.0
        %1008 = vadd.xlane.f32.xlu0 %v1007
        %v1009 = vpop.xlane.xlu0 %1008
        %v1010 = vsel %vm645, %v996, 0.0
        %1011 = vadd.xlane.f32.xlu0 %v1010
        %v1012 = vpop.xlane.xlu0 %1011
        %v1013 = vadd.f32 %v997, %v1003
        %v1014 = vadd.f32 %v998, %v1006
        %v1015 = vadd.f32 %v999, %v1009
        %v1016 = vadd.f32 %v1000, %v1012
        %v1018 = vsel %vm645, %v990, 0
        %1020 = vmatprep.subr.mxu0 0.0
        %1021 = vmatpush1.msra.mxu0 0.0
        %1022 = vmatprep.subr.mxu0 0.0
        %1023 = vmatpush1.msra.mxu0 0.0
        %1024 = vmatprep.subr.mxu0 0.0
        %1025 = vmatpush1.msra.mxu0 0.0
        %1026 = vmatprep.subr.mxu0 0.0
        %1027 = vmatpush1.msra.mxu0 0.0
        %1028 = vmatprep.subr.mxu0 0.0
        %1029 = vmatpush1.msra.mxu0 0.0
        %1030 = vmatprep.subr.mxu0 0.0
        %1031 = vmatpush1.msra.mxu0 0.0
        %1032 = vmatprep.subr.mxu0 0.0
        %1033 = vmatpush1.msra.mxu0 0.0
        %1034 = vmatprep.subr.mxu0 0.0
        %1035 = vmatpush1.msra.mxu0 0.0
        %1036 = vmatprep.subr.mxu0 0.0
        %1037 = vmatpush1.msra.mxu0 0.0
        %1038 = vmatprep.subr.mxu0 0.0
        %1039 = vmatpush1.msra.mxu0 0.0
        %1040 = vmatprep.subr.mxu0 0.0
        %1041 = vmatpush1.msra.mxu0 0.0
        %1042 = vmatprep.subr.mxu0 0.0
        %1043 = vmatpush1.msra.mxu0 0.0
        %1044 = vmatprep.subr.mxu0 0.0
        %1045 = vmatpush1.msra.mxu0 0.0
        %1046 = vmatprep.subr.mxu0 0.0
        %1047 = vmatpush1.msra.mxu0 0.0
        %1048 = vmatprep.subr.mxu0 0.0
        %1049 = vmatpush1.msra.mxu0 0.0
        %1050 = vmatprep.subr.mxu0 0.0
        %1051 = vmatpush1.msra.mxu0 %v618
        %1052 = vmatprep.subr.mxu0 0.0
        %1053 = vmatpush2.msra.mxu0 0.0
        %1054 = vmatprep.subr.mxu0 0.0
        %1055 = vmatpush2.msra.mxu0 0.0
        %1056 = vmatprep.subr.mxu0 0.0
        %1057 = vmatpush2.msra.mxu0 0.0
        %1058 = vmatprep.subr.mxu0 0.0
        %1059 = vmatpush2.msra.mxu0 0.0
        %1060 = vmatprep.subr.mxu0 0.0
        %1061 = vmatpush2.msra.mxu0 0.0
        %1062 = vmatprep.subr.mxu0 0.0
        %1063 = vmatpush2.msra.mxu0 0.0
        %1064 = vmatprep.subr.mxu0 0.0
        %1065 = vmatpush2.msra.mxu0 0.0
        %1066 = vmatprep.subr.mxu0 0.0
        %1067 = vmatpush2.msra.mxu0 0.0
        %1068 = vmatprep.subr.mxu0 0.0
        %1069 = vmatpush2.msra.mxu0 0.0
        %1070 = vmatprep.subr.mxu0 0.0
        %1071 = vmatpush2.msra.mxu0 0.0
        %1072 = vmatprep.subr.mxu0 0.0
        %1073 = vmatpush2.msra.mxu0 0.0
        %1074 = vmatprep.subr.mxu0 0.0
        %1075 = vmatpush2.msra.mxu0 0.0
        %1076 = vmatprep.subr.mxu0 0.0
        %1077 = vmatpush2.msra.mxu0 0.0
        %1078 = vmatprep.subr.mxu0 0.0
        %1079 = vmatpush2.msra.mxu0 0.0
        %1080 = vmatprep.subr.mxu0 0.0
        %1081 = vmatpush2.msra.mxu0 0.0
        %1082 = vmatprep.subr.mxu0 0.0
        %1083 = vmatpush2.msra.mxu0 0.0
        %1084 = vmatprep.mubr.f32.mxu0 0.0
        %1085 = vmatmul.mubr.f32.gmra.mxu0 %v1018
        %v1086 = vpop.f32.mrf.mxu0
        %v1087 = vadd.f32 0.0, %v1086
        %v1088 = vpop.f32.mrf.mxu0
        %1089 = vdwg.mxu0
        %v1091 = vsel %vm645, %v992, 0
        %1093 = vmatprep.subr.mxu0 0.0
        %1094 = vmatpush1.msra.mxu0 0.0
        %1095 = vmatprep.subr.mxu0 0.0
        %1096 = vmatpush1.msra.mxu0 0.0
        %1097 = vmatprep.subr.mxu0 0.0
        %1098 = vmatpush1.msra.mxu0 0.0
        %1099 = vmatprep.subr.mxu0 0.0
        %1100 = vmatpush1.msra.mxu0 0.0
        %1101 = vmatprep.subr.mxu0 0.0
        %1102 = vmatpush1.msra.mxu0 0.0
        %1103 = vmatprep.subr.mxu0 0.0
        %1104 = vmatpush1.msra.mxu0 0.0
        %1105 = vmatprep.subr.mxu0 0.0
        %1106 = vmatpush1.msra.mxu0 0.0
        %1107 = vmatprep.subr.mxu0 0.0
        %1108 = vmatpush1.msra.mxu0 0.0
        %1109 = vmatprep.subr.mxu0 0.0
        %1110 = vmatpush1.msra.mxu0 0.0
        %1111 = vmatprep.subr.mxu0 0.0
        %1112 = vmatpush1.msra.mxu0 0.0
        %1113 = vmatprep.subr.mxu0 0.0
        %1114 = vmatpush1.msra.mxu0 0.0
        %1115 = vmatprep.subr.mxu0 0.0
        %1116 = vmatpush1.msra.mxu0 0.0
        %1117 = vmatprep.subr.mxu0 0.0
        %1118 = vmatpush1.msra.mxu0 0.0
        %1119 = vmatprep.subr.mxu0 0.0
        %1120 = vmatpush1.msra.mxu0 0.0
        %1121 = vmatprep.subr.mxu0 0.0
        %1122 = vmatpush1.msra.mxu0 0.0
        %1123 = vmatprep.subr.mxu0 0.0
        %1124 = vmatpush1.msra.mxu0 %v637
        %1125 = vmatprep.subr.mxu0 0.0
        %1126 = vmatpush2.msra.mxu0 0.0
        %1127 = vmatprep.subr.mxu0 0.0
        %1128 = vmatpush2.msra.mxu0 0.0
        %1129 = vmatprep.subr.mxu0 0.0
        %1130 = vmatpush2.msra.mxu0 0.0
        %1131 = vmatprep.subr.mxu0 0.0
        %1132 = vmatpush2.msra.mxu0 0.0
        %1133 = vmatprep.subr.mxu0 0.0
        %1134 = vmatpush2.msra.mxu0 0.0
        %1135 = vmatprep.subr.mxu0 0.0
        %1136 = vmatpush2.msra.mxu0 0.0
        %1137 = vmatprep.subr.mxu0 0.0
        %1138 = vmatpush2.msra.mxu0 0.0
        %1139 = vmatprep.subr.mxu0 0.0
        %1140 = vmatpush2.msra.mxu0 0.0
        %1141 = vmatprep.subr.mxu0 0.0
        %1142 = vmatpush2.msra.mxu0 0.0
        %1143 = vmatprep.subr.mxu0 0.0
        %1144 = vmatpush2.msra.mxu0 0.0
        %1145 = vmatprep.subr.mxu0 0.0
        %1146 = vmatpush2.msra.mxu0 0.0
        %1147 = vmatprep.subr.mxu0 0.0
        %1148 = vmatpush2.msra.mxu0 0.0
        %1149 = vmatprep.subr.mxu0 0.0
        %1150 = vmatpush2.msra.mxu0 0.0
        %1151 = vmatprep.subr.mxu0 0.0
        %1152 = vmatpush2.msra.mxu0 0.0
        %1153 = vmatprep.subr.mxu0 0.0
        %1154 = vmatpush2.msra.mxu0 0.0
        %1155 = vmatprep.subr.mxu0 0.0
        %1156 = vmatpush2.msra.mxu0 0.0
        %1157 = vmatprep.mubr.f32.mxu0 0.0
        %1158 = vmatmul.mubr.f32.gmra.mxu0 %v1091
        %v1159 = vpop.f32.mrf.mxu0
        %v1160 = vadd.f32 0.0, %v1159
        %v1161 = vpop.f32.mrf.mxu0
        %1162 = vdwg.mxu0
        %v1164 = vsel %vm645, %v994, 0
        %1166 = vmatprep.subr.mxu0 0.0
        %1167 = vmatpush1.msra.mxu0 0.0
        %1168 = vmatprep.subr.mxu0 0.0
        %1169 = vmatpush1.msra.mxu0 0.0
        %1170 = vmatprep.subr.mxu0 0.0
        %1171 = vmatpush1.msra.mxu0 0.0
        %1172 = vmatprep.subr.mxu0 0.0
        %1173 = vmatpush1.msra.mxu0 0.0
        %1174 = vmatprep.subr.mxu0 0.0
        %1175 = vmatpush1.msra.mxu0 0.0
        %1176 = vmatprep.subr.mxu0 0.0
        %1177 = vmatpush1.msra.mxu0 0.0
        %1178 = vmatprep.subr.mxu0 0.0
        %1179 = vmatpush1.msra.mxu0 0.0
        %1180 = vmatprep.subr.mxu0 0.0
        %1181 = vmatpush1.msra.mxu0 0.0
        %1182 = vmatprep.subr.mxu0 0.0
        %1183 = vmatpush1.msra.mxu0 0.0
        %1184 = vmatprep.subr.mxu0 0.0
        %1185 = vmatpush1.msra.mxu0 0.0
        %1186 = vmatprep.subr.mxu0 0.0
        %1187 = vmatpush1.msra.mxu0 0.0
        %1188 = vmatprep.subr.mxu0 0.0
        %1189 = vmatpush1.msra.mxu0 0.0
        %1190 = vmatprep.subr.mxu0 0.0
        %1191 = vmatpush1.msra.mxu0 0.0
        %1192 = vmatprep.subr.mxu0 0.0
        %1193 = vmatpush1.msra.mxu0 0.0
        %1194 = vmatprep.subr.mxu0 0.0
        %1195 = vmatpush1.msra.mxu0 0.0
        %1196 = vmatprep.subr.mxu0 0.0
        %1197 = vmatpush1.msra.mxu0 %v640
        %1198 = vmatprep.subr.mxu0 0.0
        %1199 = vmatpush2.msra.mxu0 0.0
        %1200 = vmatprep.subr.mxu0 0.0
        %1201 = vmatpush2.msra.mxu0 0.0
        %1202 = vmatprep.subr.mxu0 0.0
        %1203 = vmatpush2.msra.mxu0 0.0
        %1204 = vmatprep.subr.mxu0 0.0
        %1205 = vmatpush2.msra.mxu0 0.0
        %1206 = vmatprep.subr.mxu0 0.0
        %1207 = vmatpush2.msra.mxu0 0.0
        %1208 = vmatprep.subr.mxu0 0.0
        %1209 = vmatpush2.msra.mxu0 0.0
        %1210 = vmatprep.subr.mxu0 0.0
        %1211 = vmatpush2.msra.mxu0 0.0
        %1212 = vmatprep.subr.mxu0 0.0
        %1213 = vmatpush2.msra.mxu0 0.0
        %1214 = vmatprep.subr.mxu0 0.0
        %1215 = vmatpush2.msra.mxu0 0.0
        %1216 = vmatprep.subr.mxu0 0.0
        %1217 = vmatpush2.msra.mxu0 0.0
        %1218 = vmatprep.subr.mxu0 0.0
        %1219 = vmatpush2.msra.mxu0 0.0
        %1220 = vmatprep.subr.mxu0 0.0
        %1221 = vmatpush2.msra.mxu0 0.0
        %1222 = vmatprep.subr.mxu0 0.0
        %1223 = vmatpush2.msra.mxu0 0.0
        %1224 = vmatprep.subr.mxu0 0.0
        %1225 = vmatpush2.msra.mxu0 0.0
        %1226 = vmatprep.subr.mxu0 0.0
        %1227 = vmatpush2.msra.mxu0 0.0
        %1228 = vmatprep.subr.mxu0 0.0
        %1229 = vmatpush2.msra.mxu0 0.0
        %1230 = vmatprep.mubr.f32.mxu0 0.0
        %1231 = vmatmul.mubr.f32.gmra.mxu0 %v1164
        %v1232 = vpop.f32.mrf.mxu0
        %v1233 = vadd.f32 0.0, %v1232
        %v1234 = vpop.f32.mrf.mxu0
        %1235 = vdwg.mxu0
        %v1237 = vsel %vm645, %v996, 0
        %1239 = vmatprep.subr.mxu0 0.0
        %1240 = vmatpush1.msra.mxu0 0.0
        %1241 = vmatprep.subr.mxu0 0.0
        %1242 = vmatpush1.msra.mxu0 0.0
        %1243 = vmatprep.subr.mxu0 0.0
        %1244 = vmatpush1.msra.mxu0 0.0
        %1245 = vmatprep.subr.mxu0 0.0
        %1246 = vmatpush1.msra.mxu0 0.0
        %1247 = vmatprep.subr.mxu0 0.0
        %1248 = vmatpush1.msra.mxu0 0.0
        %1249 = vmatprep.subr.mxu0 0.0
        %1250 = vmatpush1.msra.mxu0 0.0
        %1251 = vmatprep.subr.mxu0 0.0
        %1252 = vmatpush1.msra.mxu0 0.0
        %1253 = vmatprep.subr.mxu0 0.0
        %1254 = vmatpush1.msra.mxu0 0.0
        %1255 = vmatprep.subr.mxu0 0.0
        %1256 = vmatpush1.msra.mxu0 0.0
        %1257 = vmatprep.subr.mxu0 0.0
        %1258 = vmatpush1.msra.mxu0 0.0
        %1259 = vmatprep.subr.mxu0 0.0
        %1260 = vmatpush1.msra.mxu0 0.0
        %1261 = vmatprep.subr.mxu0 0.0
        %1262 = vmatpush1.msra.mxu0 0.0
        %1263 = vmatprep.subr.mxu0 0.0
        %1264 = vmatpush1.msra.mxu0 0.0
        %1265 = vmatprep.subr.mxu0 0.0
        %1266 = vmatpush1.msra.mxu0 0.0
        %1267 = vmatprep.subr.mxu0 0.0
        %1268 = vmatpush1.msra.mxu0 0.0
        %1269 = vmatprep.subr.mxu0 0.0
        %1270 = vmatpush1.msra.mxu0 %v643
        %1271 = vmatprep.subr.mxu0 0.0
        %1272 = vmatpush2.msra.mxu0 0.0
        %1273 = vmatprep.subr.mxu0 0.0
        %1274 = vmatpush2.msra.mxu0 0.0
        %1275 = vmatprep.subr.mxu0 0.0
        %1276 = vmatpush2.msra.mxu0 0.0
        %1277 = vmatprep.subr.mxu0 0.0
        %1278 = vmatpush2.msra.mxu0 0.0
        %1279 = vmatprep.subr.mxu0 0.0
        %1280 = vmatpush2.msra.mxu0 0.0
        %1281 = vmatprep.subr.mxu0 0.0
        %1282 = vmatpush2.msra.mxu0 0.0
        %1283 = vmatprep.subr.mxu0 0.0
        %1284 = vmatpush2.msra.mxu0 0.0
        %1285 = vmatprep.subr.mxu0 0.0
        %1286 = vmatpush2.msra.mxu0 0.0
        %1287 = vmatprep.subr.mxu0 0.0
        %1288 = vmatpush2.msra.mxu0 0.0
        %1289 = vmatprep.subr.mxu0 0.0
        %1290 = vmatpush2.msra.mxu0 0.0
        %1291 = vmatprep.subr.mxu0 0.0
        %1292 = vmatpush2.msra.mxu0 0.0
        %1293 = vmatprep.subr.mxu0 0.0
        %1294 = vmatpush2.msra.mxu0 0.0
        %1295 = vmatprep.subr.mxu0 0.0
        %1296 = vmatpush2.msra.mxu0 0.0
        %1297 = vmatprep.subr.mxu0 0.0
        %1298 = vmatpush2.msra.mxu0 0.0
        %1299 = vmatprep.subr.mxu0 0.0
        %1300 = vmatpush2.msra.mxu0 0.0
        %1301 = vmatprep.subr.mxu0 0.0
        %1302 = vmatpush2.msra.mxu0 0.0
        %1303 = vmatprep.mubr.f32.mxu0 0.0
        %1304 = vmatmul.mubr.f32.gmra.mxu0 %v1237
        %v1305 = vpop.f32.mrf.mxu0
        %v1306 = vadd.f32 0.0, %v1305
        %v1307 = vpop.f32.mrf.mxu0
        %1308 = vdwg.mxu0
        %v1309 = vadd.f32 %v997, %v1087
        %v1310 = vadd.f32 %v998, %v1160
        %v1311 = vadd.f32 %v999, %v1233
        %v1312 = vadd.f32 %v1000, %v1306
        %v1313 = vrcp.pop %v1013
        %v1314 = vrcp.pop %v1014
        %v1315 = vrcp.pop %v1015
        %v1316 = vrcp.pop %v1016
        %v1317 = vmul.f32 %v1309, %v1313
        %v1318 = vmul.f32 %v1310, %v1314
        %v1319 = vmul.f32 %v1311, %v1315
        %v1320 = vmul.f32 %v1312, %v1316
        %1322 = vrot.lane.b32.xlu0 %v1318, 8
        %v1323 = vpop.permute.xlu0 %1322
        %1326 = vrot.lane.b32.xlu0 %v1319, 16
        %v1327 = vpop.permute.xlu0 %1326
        %1330 = vrot.lane.b32.xlu0 %v1320, 24
        %v1331 = vpop.permute.xlu0 %1330
        %v1333 = vsel %vm645, %v1317, %v1323
        %vm1334 = vcmask 130048
        %v1335 = vsel %vm1334, %v1333, %v1327
        %vm1336 = vcmask 195584
        %v1337 = vsel %vm1336, %v1335, %v1331
        %v1338 = vld [vmem:[#allocation5] sm:$0xff]
        %v1339 = vld [vmem:[#allocation5 + $0x8] sm:$0xff]
        %v1340 = vld [vmem:[#allocation5 + $0x10] sm:$0xff]
        %v1341 = vld [vmem:[#allocation5 + $0x18] sm:$0xff]
        %v1343 = vsel %vm380, %v1337, 0
        %1345 = vmatprep.subr.mxu0 0.0
        %1346 = vmatpush1.msra.mxu0 0.0
        %1347 = vmatprep.subr.mxu0 0.0
        %1348 = vmatpush1.msra.mxu0 0.0
        %1349 = vmatprep.subr.mxu0 0.0
        %1350 = vmatpush1.msra.mxu0 0.0
        %1351 = vmatprep.subr.mxu0 0.0
        %1352 = vmatpush1.msra.mxu0 0.0
        %1353 = vmatprep.subr.mxu0 0.0
        %1354 = vmatpush1.msra.mxu0 0.0
        %1355 = vmatprep.subr.mxu0 0.0
        %1356 = vmatpush1.msra.mxu0 0.0
        %1357 = vmatprep.subr.mxu0 0.0
        %1358 = vmatpush1.msra.mxu0 0.0
        %1359 = vmatprep.subr.mxu0 0.0
        %1360 = vmatpush1.msra.mxu0 0.0
        %1361 = vmatprep.subr.mxu0 0.0
        %1362 = vmatpush1.msra.mxu0 0.0
        %1363 = vmatprep.subr.mxu0 0.0
        %1364 = vmatpush1.msra.mxu0 0.0
        %1365 = vmatprep.subr.mxu0 0.0
        %1366 = vmatpush1.msra.mxu0 0.0
        %1367 = vmatprep.subr.mxu0 0.0
        %1368 = vmatpush1.msra.mxu0 0.0
        %1369 = vmatprep.subr.mxu0 0.0
        %1370 = vmatpush1.msra.mxu0 %v1341
        %1371 = vmatprep.subr.mxu0 0.0
        %1372 = vmatpush1.msra.mxu0 %v1340
        %1373 = vmatprep.subr.mxu0 0.0
        %1374 = vmatpush1.msra.mxu0 %v1339
        %1375 = vmatprep.subr.mxu0 0.0
        %1376 = vmatpush1.msra.mxu0 %v1338
        %1377 = vmatprep.subr.mxu0 0.0
        %1378 = vmatpush2.msra.mxu0 0.0
        %1379 = vmatprep.subr.mxu0 0.0
        %1380 = vmatpush2.msra.mxu0 0.0
        %1381 = vmatprep.subr.mxu0 0.0
        %1382 = vmatpush2.msra.mxu0 0.0
        %1383 = vmatprep.subr.mxu0 0.0
        %1384 = vmatpush2.msra.mxu0 0.0
        %1385 = vmatprep.subr.mxu0 0.0
        %1386 = vmatpush2.msra.mxu0 0.0
        %1387 = vmatprep.subr.mxu0 0.0
        %1388 = vmatpush2.msra.mxu0 0.0
        %1389 = vmatprep.subr.mxu0 0.0
        %1390 = vmatpush2.msra.mxu0 0.0
        %1391 = vmatprep.subr.mxu0 0.0
        %1392 = vmatpush2.msra.mxu0 0.0
        %1393 = vmatprep.subr.mxu0 0.0
        %1394 = vmatpush2.msra.mxu0 0.0
        %1395 = vmatprep.subr.mxu0 0.0
        %1396 = vmatpush2.msra.mxu0 0.0
        %1397 = vmatprep.subr.mxu0 0.0
        %1398 = vmatpush2.msra.mxu0 0.0
        %1399 = vmatprep.subr.mxu0 0.0
        %1400 = vmatpush2.msra.mxu0 0.0
        %1401 = vmatprep.subr.mxu0 0.0
        %1402 = vmatpush2.msra.mxu0 0.0
        %1403 = vmatprep.subr.mxu0 0.0
        %1404 = vmatpush2.msra.mxu0 0.0
        %1405 = vmatprep.subr.mxu0 0.0
        %1406 = vmatpush2.msra.mxu0 0.0
        %1407 = vmatprep.subr.mxu0 0.0
        %1408 = vmatpush2.msra.mxu0 0.0
        %1409 = vmatprep.mubr.f32.mxu0 0.0
        %1410 = vmatmul.mubr.f32.gmra.mxu0 %v1343
        %v1411 = vpop.f32.mrf.mxu0
        %v1412 = vadd.f32 0.0, %v1411
        %v1413 = vpop.f32.mrf.mxu0
        %1414 = vdwg.mxu0
        %v1415 = vadd.f32 %v377, %v1412
        %v1416 = vld [vmem:[%s2] sm:$0x1]
        %v1417 = vmul.f32 %v1415, %v1415
        %v1418 = vsel %vm380, %v1417, 0.0
        %1419 = vadd.xlane.f32.xlu0 %v1418
        %v1420 = vpop.xlane.xlu0 %1419
        %v1421 = vmul.f32 %v1420, %v384
        %v1422 = vadd.f32 %v1421, 1.1920929e-07
        %v1423 = vrsqrt.pop %v1422
        %v1424 = vmul.f32 %v1415, %v1423
        %v1426 = vlaneseq
        %v1427 = vshrl.u32 %v1426, 7
        %v1428 = vsub.s32 0, %v1427
        %v1429 = vrot.slane %v1416, %v1428
        %v1431 = vmul.f32 %v1424, %v1429
        %v1432 = vld [vmem:[#allocation7] sm:$0xff]
        %v1433 = vld [vmem:[#allocation7 + $0x8] sm:$0xff]
        %v1434 = vld [vmem:[#allocation7 + $0x10] sm:$0xff]
        %v1435 = vld [vmem:[#allocation7 + $0x18] sm:$0xff]
        %v1437 = vsel %vm380, %v1431, 0
        %1439 = vmatprep.subr.mxu0 0.0
        %1440 = vmatpush1.msra.mxu0 0.0
        %1441 = vmatprep.subr.mxu0 0.0
        %1442 = vmatpush1.msra.mxu0 0.0
        %1443 = vmatprep.subr.mxu0 0.0
        %1444 = vmatpush1.msra.mxu0 0.0
        %1445 = vmatprep.subr.mxu0 0.0
        %1446 = vmatpush1.msra.mxu0 0.0
        %1447 = vmatprep.subr.mxu0 0.0
        %1448 = vmatpush1.msra.mxu0 0.0
        %1449 = vmatprep.subr.mxu0 0.0
        %1450 = vmatpush1.msra.mxu0 0.0
        %1451 = vmatprep.subr.mxu0 0.0
        %1452 = vmatpush1.msra.mxu0 0.0
        %1453 = vmatprep.subr.mxu0 0.0
        %1454 = vmatpush1.msra.mxu0 0.0
        %1455 = vmatprep.subr.mxu0 0.0
        %1456 = vmatpush1.msra.mxu0 0.0
        %1457 = vmatprep.subr.mxu0 0.0
        %1458 = vmatpush1.msra.mxu0 0.0
        %1459 = vmatprep.subr.mxu0 0.0
        %1460 = vmatpush1.msra.mxu0 0.0
        %1461 = vmatprep.subr.mxu0 0.0
        %1462 = vmatpush1.msra.mxu0 0.0
        %1463 = vmatprep.subr.mxu0 0.0
        %1464 = vmatpush1.msra.mxu0 %v1435
        %1465 = vmatprep.subr.mxu0 0.0
        %1466 = vmatpush1.msra.mxu0 %v1434
        %1467 = vmatprep.subr.mxu0 0.0
        %1468 = vmatpush1.msra.mxu0 %v1433
        %1469 = vmatprep.subr.mxu0 0.0
        %1470 = vmatpush1.msra.mxu0 %v1432
        %1471 = vmatprep.subr.mxu0 0.0
        %1472 = vmatpush2.msra.mxu0 0.0
        %1473 = vmatprep.subr.mxu0 0.0
        %1474 = vmatpush2.msra.mxu0 0.0
        %1475 = vmatprep.subr.mxu0 0.0
        %1476 = vmatpush2.msra.mxu0 0.0
        %1477 = vmatprep.subr.mxu0 0.0
        %1478 = vmatpush2.msra.mxu0 0.0
        %1479 = vmatprep.subr.mxu0 0.0
        %1480 = vmatpush2.msra.mxu0 0.0
        %1481 = vmatprep.subr.mxu0 0.0
        %1482 = vmatpush2.msra.mxu0 0.0
        %1483 = vmatprep.subr.mxu0 0.0
        %1484 = vmatpush2.msra.mxu0 0.0
        %1485 = vmatprep.subr.mxu0 0.0
        %1486 = vmatpush2.msra.mxu0 0.0
        %1487 = vmatprep.subr.mxu0 0.0
        %1488 = vmatpush2.msra.mxu0 0.0
        %1489 = vmatprep.subr.mxu0 0.0
        %1490 = vmatpush2.msra.mxu0 0.0
        %1491 = vmatprep.subr.mxu0 0.0
        %1492 = vmatpush2.msra.mxu0 0.0
        %1493 = vmatprep.subr.mxu0 0.0
        %1494 = vmatpush2.msra.mxu0 0.0
        %1495 = vmatprep.subr.mxu0 0.0
        %1496 = vmatpush2.msra.mxu0 0.0
        %1497 = vmatprep.subr.mxu0 0.0
        %1498 = vmatpush2.msra.mxu0 0.0
        %1499 = vmatprep.subr.mxu0 0.0
        %1500 = vmatpush2.msra.mxu0 0.0
        %1501 = vmatprep.subr.mxu0 0.0
        %1502 = vmatpush2.msra.mxu0 0.0
        %1503 = vmatprep.mubr.f32.mxu0 0.0
        %1504 = vmatmul.mubr.f32.gmra.mxu0 %v1437
        %v1505 = vpop.f32.mrf.mxu0
        %v1506 = vadd.f32 0.0, %v1505
        %v1507 = vpop.f32.mrf.mxu0
        %1508 = vdwg.mxu0
        %v1509 = vxor.u32 %v1506, 2147483648
        %v1510 = vmul.f32 %v1509, 1.442695
        %v1511 = vpow.pop %v1510
        %v1512 = vadd.f32 %v1511, 1.0
        %v1513 = vrcp.pop %v1512
        %v1514 = vmul.f32 1.0, %v1513
        %v1515 = vmul.f32 %v1506, %v1514
        %v1516 = vld [vmem:[%s8] sm:$0xff]
        %v1517 = vld [vmem:[%s8 + $0x8] sm:$0xff]
        %v1518 = vld [vmem:[%s8 + $0x10] sm:$0xff]
        %v1519 = vld [vmem:[%s8 + $0x18] sm:$0xff]
        %v1520 = vld [vmem:[%s8 + $0x20] sm:$0xff]
        %v1521 = vld [vmem:[%s8 + $0x28] sm:$0xff]
        %v1522 = vld [vmem:[%s8 + $0x30] sm:$0xff]
        %v1523 = vld [vmem:[%s8 + $0x38] sm:$0xff]
        %vm1524 = vcmask 523264
        %v1526 = vsel %vm1524, %v1515, 0
        %1528 = vmatprep.subr.mxu0 0.0
        %1529 = vmatpush1.msra.mxu0 0.0
        %1530 = vmatprep.subr.mxu0 0.0
        %1531 = vmatpush1.msra.mxu0 0.0
        %1532 = vmatprep.subr.mxu0 0.0
        %1533 = vmatpush1.msra.mxu0 0.0
        %1534 = vmatprep.subr.mxu0 0.0
        %1535 = vmatpush1.msra.mxu0 0.0
        %1536 = vmatprep.subr.mxu0 0.0
        %1537 = vmatpush1.msra.mxu0 0.0
        %1538 = vmatprep.subr.mxu0 0.0
        %1539 = vmatpush1.msra.mxu0 0.0
        %1540 = vmatprep.subr.mxu0 0.0
        %1541 = vmatpush1.msra.mxu0 0.0
        %1542 = vmatprep.subr.mxu0 0.0
        %1543 = vmatpush1.msra.mxu0 0.0
        %1544 = vmatprep.subr.mxu0 0.0
        %1545 = vmatpush1.msra.mxu0 %v1523
        %1546 = vmatprep.subr.mxu0 0.0
        %1547 = vmatpush1.msra.mxu0 %v1522
        %1548 = vmatprep.subr.mxu0 0.0
        %1549 = vmatpush1.msra.mxu0 %v1521
        %1550 = vmatprep.subr.mxu0 0.0
        %1551 = vmatpush1.msra.mxu0 %v1520
        %1552 = vmatprep.subr.mxu0 0.0
        %1553 = vmatpush1.msra.mxu0 %v1519
        %1554 = vmatprep.subr.mxu0 0.0
        %1555 = vmatpush1.msra.mxu0 %v1518
        %1556 = vmatprep.subr.mxu0 0.0
        %1557 = vmatpush1.msra.mxu0 %v1517
        %1558 = vmatprep.subr.mxu0 0.0
        %1559 = vmatpush1.msra.mxu0 %v1516
        %1560 = vmatprep.subr.mxu0 0.0
        %1561 = vmatpush2.msra.mxu0 0.0
        %1562 = vmatprep.subr.mxu0 0.0
        %1563 = vmatpush2.msra.mxu0 0.0
        %1564 = vmatprep.subr.mxu0 0.0
        %1565 = vmatpush2.msra.mxu0 0.0
        %1566 = vmatprep.subr.mxu0 0.0
        %1567 = vmatpush2.msra.mxu0 0.0
        %1568 = vmatprep.subr.mxu0 0.0
        %1569 = vmatpush2.msra.mxu0 0.0
        %1570 = vmatprep.subr.mxu0 0.0
        %1571 = vmatpush2.msra.mxu0 0.0
        %1572 = vmatprep.subr.mxu0 0.0
        %1573 = vmatpush2.msra.mxu0 0.0
        %1574 = vmatprep.subr.mxu0 0.0
        %1575 = vmatpush2.msra.mxu0 0.0
        %1576 = vmatprep.subr.mxu0 0.0
        %1577 = vmatpush2.msra.mxu0 0.0
        %1578 = vmatprep.subr.mxu0 0.0
        %1579 = vmatpush2.msra.mxu0 0.0
        %1580 = vmatprep.subr.mxu0 0.0
        %1581 = vmatpush2.msra.mxu0 0.0
        %1582 = vmatprep.subr.mxu0 0.0
        %1583 = vmatpush2.msra.mxu0 0.0
        %1584 = vmatprep.subr.mxu0 0.0
        %1585 = vmatpush2.msra.mxu0 0.0
        %1586 = vmatprep.subr.mxu0 0.0
        %1587 = vmatpush2.msra.mxu0 0.0
        %1588 = vmatprep.subr.mxu0 0.0
        %1589 = vmatpush2.msra.mxu0 0.0
        %1590 = vmatprep.subr.mxu0 0.0
        %1591 = vmatpush2.msra.mxu0 0.0
        %1592 = vmatprep.mubr.f32.mxu0 0.0
        %1593 = vmatmul.mubr.f32.gmra.mxu0 %v1526
        %v1594 = vpop.f32.mrf.mxu0
        %v1595 = vadd.f32 0.0, %v1594
        %v1596 = vpop.f32.mrf.mxu0
        %1597 = vdwg.mxu0
        %v1598 = vadd.f32 %v1415, %v1595
        %1599 = vst.msk [vmem:[%s376] sm:$0xff] %vm380, %v1598
        %s1600 = sand.u32 %s229, 1
        %s1601 = scalar_lea.sflag [#allocation4], %s1600
        %s1602 = sand.u32 %s229, 1
        %s1603 = smul.addr %s1602, 8
        %s1604 = scalar_lea.vmem [#allocation8], %s1603
        // Predicated region
        $region69: #{tpu_custom_call.1} parent=55 // pred_check
          %p1605 = pneg %p239
        $region70: #{tpu_custom_call.1} parent=55 // pred_check_branch
          %1607 = sbr.rel (%p1605) target = $region72
        $region71: #{tpu_custom_call.1} parent=55 // pred_region
          %s1609 = ssub.s32 128, 128
          %1610 = vsyncadd %s1601, %s1609
          %s1611 = smul.addr %s27, 128
          %s1612 = scalar_lea.hbm %s9, %s1611
          %s1614 = sshll.u32 %s1604, 4
          %s1615 = int_to_ptr.vmem [resolvable:$true] %s1614
          %1617 = dma.vmem_to_hbm [thread:$0]  %s1615, 128, %s1612, %s1601
        $region72: #{tpu_custom_call.1} parent=55 // pred_fallthru
          _
      $region56: #{tpu_custom_call.1} parent=5 // pred_fallthru
        _
      %p1618 = scmp.le.s32.totalorder 2, %s22
      // Predicated region
      $region73: #{tpu_custom_call.1} parent=5 // pred_check
        %p1619 = pneg %p1618
      $region74: #{tpu_custom_call.1} parent=5 // pred_check_branch
        %1621 = sbr.rel (%p1619) target = $region76
      $region75: #{tpu_custom_call.1} parent=5 // pred_region
        %s1622 = ssub.s32 %s22, 2
        // Predicated region
        $region77: #{tpu_custom_call.1} parent=75 // pred_check
          %p1623 = pneg %p245
        $region78: #{tpu_custom_call.1} parent=75 // pred_check_branch
          %1625 = sbr.rel (%p1623) target = $region80
        $region79: #{tpu_custom_call.1} parent=75 // pred_region
          %s1626 = sand.u32 %s230, 1
          %s1627 = scalar_lea.sflag [#allocation4], %s1626
          %s1628 = sand.u32 %s230, 1
          %s1629 = smul.addr %s1628, 8
          %s1630 = scalar_lea.vmem [#allocation8], %s1629
          %1631 = dma.done %s1627, 128
        $region80: #{tpu_custom_call.1} parent=75 // pred_fallthru
          _
      $region76: #{tpu_custom_call.1} parent=5 // pred_fallthru
        _
    $region6: #{tpu_custom_call.1} parent=1 // loop_footer
      %s26 = sadd.s32 1, %s22
    $region7: #{tpu_custom_call.1} parent=1 // loop_footer_branch
      %21 = sbr.rel target = $region3
    $region8: #{tpu_custom_call.1} parent=1 // loop_exit
      _
    %1632 = vsyncpa [#allocation3], 1
    %s1633 = scalar_lea.sflag [#allocation3], 1
    %1634 = vsyncpa %s1633, 1
    %1635 = vsyncpa [#allocation6], 1
    %1636 = vsyncpa [#allocation4], 1
    %s1637 = scalar_lea.sflag [#allocation4], 1
    %1638 = vsyncpa %s1637, 1

</llo_original>
